<compile_context>
chip_gen: v5e
topology: v5e:2x2
jax: 0.10.0
libtpu: 0.0.40
codegen_flags: <defaults>
</compile_context>

<pallas_src>
import math
import functools

import jax
import jax.numpy as jnp
from jax.experimental import pallas as pl
from jax.experimental.pallas import tpu as pltpu


def _mha_kernel(q_ref, k_ref, v_ref,
                wq_ref, wk_ref, wv_ref, wo_ref,
                gamma_ref, beta_ref,
                out_ref, attn_ref,
                *, n_head, d_k, d_v, len_q, len_k, eps, compute_dtype):
    """One grid step processes `bb` batches.

    Block views:
      q_ref    : (bb, Lq, D)
      k_ref    : (bb, Lk, D)
      v_ref    : (bb, Lk, D)
      wq_ref   : (H, D, d_k)   pre-split per head (wrapper-side)
      wk_ref   : (H, D, d_k)
      wv_ref   : (H, D, d_v)
      wo_ref   : (H, d_v, D)
      gamma/beta : (1, D)
      out_ref  : (bb, Lq, D)
      attn_ref : (bb, H, Lq, Lk)   final layout, no wrapper transpose needed
    """
    bb = q_ref.shape[0]
    H, Lq, Lk = n_head, len_q, len_k
    cdt = compute_dtype
    f32 = jnp.float32

    q3 = q_ref[...]                                   # (bb, Lq, D), residual source
    D = q3.shape[-1]
    Mq = bb * Lq
    Mk = bb * Lk

    # For bb == 1 these are plain squeezes; for bb > 1 they fold batch into the
    # matmul M dim (requires Lq, Lk multiples of 8 — asserted in the wrapper).
    q2 = q3.reshape(Mq, D)
    k2 = k_ref[...].reshape(Mk, D)
    v2 = v_ref[...].reshape(Mk, D)

    # --- head-batched Q/K/V projections (no per-head loop, no lane slicing) ---
    qb = jnp.broadcast_to(q2.astype(cdt)[None], (H, Mq, D))
    kb = jnp.broadcast_to(k2.astype(cdt)[None], (H, Mk, D))
    vb = jnp.broadcast_to(v2.astype(cdt)[None], (H, Mk, D))

    qh = jnp.einsum('hmd,hdn->hmn', qb, wq_ref[...].astype(cdt),
                    preferred_element_type=f32)       # (H, Mq, d_k)
    kh = jnp.einsum('hmd,hdn->hmn', kb, wk_ref[...].astype(cdt),
                    preferred_element_type=f32)       # (H, Mk, d_k)
    vh = jnp.einsum('hmd,hdn->hmn', vb, wv_ref[...].astype(cdt),
                    preferred_element_type=f32)       # (H, Mk, d_v)

    # Temperature hoisted: one multiply over the whole projected Q.
    qh = qh * f32(1.0 / math.sqrt(d_k))

    # z = h*bb + b.  For bb == 1 these reshapes are identities.
    qz = qh.reshape(H * bb, Lq, d_k)
    kz = kh.reshape(H * bb, Lk, d_k)
    vz = vh.reshape(H * bb, Lk, d_v)

    # Scores for all heads/batches in one batched MXU contraction.
    s = jnp.einsum('zqd,zkd->zqk', qz.astype(cdt), kz.astype(cdt),
                   preferred_element_type=f32)        # (Z, Lq, Lk)

    # Numerically stable softmax; divide replaced by exact reciprocal-multiply.
    s = s - jnp.max(s, axis=-1, keepdims=True)
    e = jnp.exp(s)
    denom = jnp.sum(e, axis=-1, keepdims=True)
    a = e * pl.reciprocal(denom, approx=False)        # exact: attn is returned
    # TODO(synk): attention dropout (p=0.1) omitted — eval-mode identity.

    # Store attention weights directly in final (B, H, Lq, Lk) order.
    if bb == 1:
        attn_blk = a.reshape(1, H, Lq, Lk)
    else:
        attn_blk = jnp.transpose(a.reshape(H, bb, Lq, Lk), (1, 0, 2, 3))
    attn_ref[...] = attn_blk.astype(attn_ref.dtype)

    # Attention-weighted values, all heads/batches batched.
    o_z = jnp.einsum('zqk,zkd->zqd', a.astype(cdt), vz.astype(cdt),
                     preferred_element_type=f32)      # (Z, Lq, d_v)

    # Output projection: concat_h(o_h) @ Wo  ==  sum_h  o_h @ Wo[h]  — done as a
    # head-batched matmul followed by a cheap major-dim sum (no head re-concat).
    wo3 = wo_ref[...].astype(cdt)                     # (H, d_v, D)
    if bb == 1:
        wo_z = wo3
    else:
        wo_z = jnp.broadcast_to(wo3[:, None], (H, bb, d_v, D)).reshape(H * bb, d_v, D)
    oc = jnp.einsum('zqd,zdn->zqn', o_z.astype(cdt), wo_z,
                    preferred_element_type=f32)       # (Z, Lq, D)
    if bb == 1:
        o = jnp.sum(oc, axis=0, keepdims=True)        # (1, Lq, D)
    else:
        o = jnp.sum(oc.reshape(H, bb, Lq, D), axis=0) # (bb, Lq, D)

    # TODO(synk): output dropout (p=0.1) omitted — eval-mode identity.
    o = o + q3.astype(f32)                            # residual

    # LayerNorm over the feature dim (biased variance, eps=1e-6), affine.
    mean = jnp.mean(o, axis=-1, keepdims=True)
    var = jnp.mean(jnp.square(o - mean), axis=-1, keepdims=True)
    o = (o - mean) * jax.lax.rsqrt(var + f32(eps))
    g = gamma_ref[...].astype(f32).reshape(1, 1, D)
    b = beta_ref[...].astype(f32).reshape(1, 1, D)
    o = o * g + b

    out_ref[...] = o.astype(out_ref.dtype)


def multi_head_attention(q, k, v, params, *, n_head, d_k, d_v, eps=1e-6,
                         batch_block=1, compute_dtype=None,
                         attn_dtype=jnp.float32, vmem_limit_bytes=None):
    """q,k,v: (B, L, D).  Returns (out (B,Lq,D), attn (B,H,Lq,Lk)).

    batch_block:   batches per grid step (default 1 => B grid steps: gives DMA /
                   compute overlap and shards across v7x's two TensorCores).
                   batch_block > 1 requires Lq and Lk to be multiples of 8.
    compute_dtype: dtype fed to the MXU (default: q.dtype).  Pass bf16 inputs /
                   weights (or compute_dtype=jnp.bfloat16) for the fast MXU path
                   on v6e/v7x; accumulation/softmax/LayerNorm stay float32.
    attn_dtype:    dtype of the returned attention weights (f32 default; bf16
                   halves the attn HBM writeback if the caller tolerates it).
    """
    B, Lq, D = q.shape
    Lk = k.shape[1]
    assert v.shape[1] == Lk
    wq, wk, wv, wo, gamma, beta = params

    if batch_block is None:
        batch_block = 1
    assert B % batch_block == 0
    n_blocks = B // batch_block
    assert batch_block == 1 or (Lq % 8 == 0 and Lk % 8 == 0), \
        "batch_block > 1 folds (batch, seq): Lq/Lk must be multiples of 8"
    if compute_dtype is None:
        compute_dtype = q.dtype

    # Pre-split weights per head wrapper-side (one-time, free, tiny tensors).
    wq3 = jnp.transpose(wq.reshape(D, n_head, d_k), (1, 0, 2))   # (H, D, d_k)
    wk3 = jnp.transpose(wk.reshape(D, n_head, d_k), (1, 0, 2))   # (H, D, d_k)
    wv3 = jnp.transpose(wv.reshape(D, n_head, d_v), (1, 0, 2))   # (H, D, d_v)
    wo3 = wo.reshape(n_head, d_v, D)                             # (H, d_v, D)

    kernel = functools.partial(_mha_kernel, n_head=n_head, d_k=d_k, d_v=d_v,
                               len_q=Lq, len_k=Lk, eps=eps,
                               compute_dtype=compute_dtype)

    grid = (n_blocks,)
    in_specs = [
        pl.BlockSpec((batch_block, Lq, D), lambda i: (i, 0, 0)),      # q
        pl.BlockSpec((batch_block, Lk, D), lambda i: (i, 0, 0)),      # k
        pl.BlockSpec((batch_block, Lk, D), lambda i: (i, 0, 0)),      # v
        pl.BlockSpec((n_head, D, d_k), lambda i: (0, 0, 0)),          # wq (split)
        pl.BlockSpec((n_head, D, d_k), lambda i: (0, 0, 0)),          # wk (split)
        pl.BlockSpec((n_head, D, d_v), lambda i: (0, 0, 0)),          # wv (split)
        pl.BlockSpec((n_head, d_v, D), lambda i: (0, 0, 0)),          # wo (split)
        pl.BlockSpec((1, D), lambda i: (0, 0)),                       # gamma
        pl.BlockSpec((1, D), lambda i: (0, 0)),                       # beta
    ]
    out_specs = [
        pl.BlockSpec((batch_block, Lq, D), lambda i: (i, 0, 0)),              # out
        pl.BlockSpec((batch_block, n_head, Lq, Lk), lambda i: (i, 0, 0, 0)),  # attn
    ]
    out_shapes = [
        jax.ShapeDtypeStruct((B, Lq, D), q.dtype),
        jax.ShapeDtypeStruct((B, n_head, Lq, Lk), attn_dtype),
    ]

    out, attn = pl.pallas_call(
        kernel,
        grid=grid,
        in_specs=in_specs,
        out_specs=out_specs,
        out_shape=out_shapes,
        compiler_params=pltpu.CompilerParams(
            dimension_semantics=("parallel",),
            vmem_limit_bytes=vmem_limit_bytes),
    )(q, k, v, wq3, wk3, wv3, wo3, gamma, beta)

    return out, attn


def init_params(key, d_model, n_head, d_k, d_v):
    """Deterministic synthetic parameters (shapes match the nn.Module)."""
    k1, k2, k3, k4 = jax.random.split(key, 4)
    scale = 1.0 / math.sqrt(d_model)
    wq = jax.random.normal(k1, (d_model, n_head * d_k), jnp.float32) * scale
    wk = jax.random.normal(k2, (d_model, n_head * d_k), jnp.float32) * scale
    wv = jax.random.normal(k3, (d_model, n_head * d_v), jnp.float32) * scale
    wo = (jax.random.normal(k4, (n_head * d_v, d_model), jnp.float32)
          / math.sqrt(n_head * d_v))
    gamma = jnp.ones((1, d_model), jnp.float32)    # LayerNorm weight
    beta = jnp.zeros((1, d_model), jnp.float32)    # LayerNorm bias
    return (wq, wk, wv, wo, gamma, beta)


if __name__ == "__main__":
    # Small shapes consistent with the module's forward.
    B, L, D = 2, 8, 32          # batch, sequence length, d_model
    n_head, d_k, d_v = 4, 8, 8

    key = jax.random.PRNGKey(0)
    kq, kk, kv, kp = jax.random.split(key, 4)
    q = jax.random.normal(kq, (B, L, D), jnp.float32)
    k = jax.random.normal(kk, (B, L, D), jnp.float32)
    v = jax.random.normal(kv, (B, L, D), jnp.float32)
    params = init_params(kp, D, n_head, d_k, d_v)

    out, attn = multi_head_attention(q, k, v, params,
                                     n_head=n_head, d_k=d_k, d_v=d_v)
    jax.block_until_ready((out, attn))

    assert out.shape == (B, L, D)
    assert attn.shape == (B, n_head, L, L)

    # Pure-JAX reference (same math as the PyTorch module, eval mode).
    def reference(q, k, v, params):
        wq, wk, wv, wo, gamma, beta = params
        qh = (q @ wq).reshape(B, L, n_head, d_k).transpose(0, 2, 1, 3)
        kh = (k @ wk).reshape(B, L, n_head, d_k).transpose(0, 2, 1, 3)
        vh = (v @ wv).reshape(B, L, n_head, d_v).transpose(0, 2, 1, 3)
        s = jnp.einsum('bhqd,bhkd->bhqk', qh / math.sqrt(d_k), kh)
        a = jax.nn.softmax(s, axis=-1)
        o = jnp.einsum('bhqk,bhkd->bhqd', a, vh)
        o = o.transpose(0, 2, 1, 3).reshape(B, L, n_head * d_v)
        o = o @ wo + q
        mean = o.mean(-1, keepdims=True)
        var = ((o - mean) ** 2).mean(-1, keepdims=True)
        o = (o - mean) * jax.lax.rsqrt(var + 1e-6) * gamma[0] + beta[0]
        return o, a

    ref_out, ref_attn = reference(q, k, v, params)
    assert jnp.allclose(out, ref_out, atol=1e-4, rtol=1e-4)
    assert jnp.allclose(attn, ref_attn, atol=1e-5, rtol=1e-5)

    print("KERNEL_OK")
</pallas_src>

<mosaic_0001>
module attributes {stable_mosaic.version = 11 : i64} {
  func.func @_mha_kernel(%arg0: i32, %arg1: memref<1x8x32xf32, #tpu.memory_space<vmem>>, %arg2: memref<1x8x32xf32, #tpu.memory_space<vmem>>, %arg3: memref<1x8x32xf32, #tpu.memory_space<vmem>>, %arg4: memref<4x32x8xf32, #tpu.memory_space<vmem>>, %arg5: memref<4x32x8xf32, #tpu.memory_space<vmem>>, %arg6: memref<4x32x8xf32, #tpu.memory_space<vmem>>, %arg7: memref<4x8x32xf32, #tpu.memory_space<vmem>>, %arg8: memref<1x32xf32, #tpu.memory_space<vmem>>, %arg9: memref<1x32xf32, #tpu.memory_space<vmem>>, %arg10: memref<1x8x32xf32, #tpu.memory_space<vmem>>, %arg11: memref<1x4x8x8xf32, #tpu.memory_space<vmem>>) attributes {dimension_semantics = [#tpu.dimension_semantics<parallel>], iteration_bounds = array<i64: 2>, scalar_prefetch = 0 : i64, scratch_operands = 0 : i64, tpu.core_type = #tpu.core_type<tc>, window_params = [{transform_indices = @transform_0, window_bounds = array<i64: 1, 8, 32>}, {transform_indices = @transform_1, window_bounds = array<i64: 1, 8, 32>}, {transform_indices = @transform_2, window_bounds = array<i64: 1, 8, 32>}, {pipeline_mode = #tpu.pipeline_mode<synchronous>, transform_indices = @transform_3, window_bounds = array<i64: 4, 32, 8>}, {pipeline_mode = #tpu.pipeline_mode<synchronous>, transform_indices = @transform_4, window_bounds = array<i64: 4, 32, 8>}, {pipeline_mode = #tpu.pipeline_mode<synchronous>, transform_indices = @transform_5, window_bounds = array<i64: 4, 32, 8>}, {pipeline_mode = #tpu.pipeline_mode<synchronous>, transform_indices = @transform_6, window_bounds = array<i64: 4, 8, 32>}, {pipeline_mode = #tpu.pipeline_mode<synchronous>, transform_indices = @transform_7, window_bounds = array<i64: 1, 32>}, {pipeline_mode = #tpu.pipeline_mode<synchronous>, transform_indices = @transform_8, window_bounds = array<i64: 1, 32>}, {transform_indices = @transform_9, window_bounds = array<i64: 1, 8, 32>}, {transform_indices = @transform_10, window_bounds = array<i64: 1, 4, 8, 8>}]} {
    %c0 = arith.constant 0 : index
    %c0_0 = arith.constant 0 : index
    %c0_1 = arith.constant 0 : index
    %0 = vector.load %arg1[%c0, %c0_0, %c0_1] : memref<1x8x32xf32, #tpu.memory_space<vmem>>, vector<1x8x32xf32>
    %1 = vector.shape_cast %0 : vector<1x8x32xf32> to vector<8x32xf32>
    %c0_2 = arith.constant 0 : index
    %c0_3 = arith.constant 0 : index
    %c0_4 = arith.constant 0 : index
    %2 = vector.load %arg2[%c0_2, %c0_3, %c0_4] : memref<1x8x32xf32, #tpu.memory_space<vmem>>, vector<1x8x32xf32>
    %3 = vector.shape_cast %2 : vector<1x8x32xf32> to vector<8x32xf32>
    %c0_5 = arith.constant 0 : index
    %c0_6 = arith.constant 0 : index
    %c0_7 = arith.constant 0 : index
    %4 = vector.load %arg3[%c0_5, %c0_6, %c0_7] : memref<1x8x32xf32, #tpu.memory_space<vmem>>, vector<1x8x32xf32>
    %5 = vector.shape_cast %4 : vector<1x8x32xf32> to vector<8x32xf32>
    %6 = vector.shape_cast %1 : vector<8x32xf32> to vector<1x8x32xf32>
    %7 = vector.shape_cast %6 : vector<1x8x32xf32> to vector<1x8x32xf32>
    %8 = vector.broadcast %7 : vector<1x8x32xf32> to vector<4x8x32xf32>
    %9 = vector.shape_cast %3 : vector<8x32xf32> to vector<1x8x32xf32>
    %10 = vector.shape_cast %9 : vector<1x8x32xf32> to vector<1x8x32xf32>
    %11 = vector.broadcast %10 : vector<1x8x32xf32> to vector<4x8x32xf32>
    %12 = vector.shape_cast %5 : vector<8x32xf32> to vector<1x8x32xf32>
    %13 = vector.shape_cast %12 : vector<1x8x32xf32> to vector<1x8x32xf32>
    %14 = vector.broadcast %13 : vector<1x8x32xf32> to vector<4x8x32xf32>
    %c0_8 = arith.constant 0 : index
    %c0_9 = arith.constant 0 : index
    %c0_10 = arith.constant 0 : index
    %15 = vector.load %arg4[%c0_8, %c0_9, %c0_10] : memref<4x32x8xf32, #tpu.memory_space<vmem>>, vector<4x32x8xf32>
    "tpu.trace_start"() <{level = 10 : i32, message = "hmd,hdn->hmn"}> : () -> ()
    %cst = arith.constant dense<0.000000e+00> : vector<4x8x8xf32>
    %16 = tpu.matmul %8, %15, %cst {dimension_numbers = #tpu.dot_dimension_numbers<[2], [1], [1], [2], [0, 0, 0, 1, 1, 2], [0], [0]>} : vector<4x8x32xf32>, vector<4x32x8xf32>, vector<4x8x8xf32> -> vector<4x8x8xf32>
    "tpu.trace_stop"() : () -> ()
    %c0_11 = arith.constant 0 : index
    %c0_12 = arith.constant 0 : index
    %c0_13 = arith.constant 0 : index
    %17 = vector.load %arg5[%c0_11, %c0_12, %c0_13] : memref<4x32x8xf32, #tpu.memory_space<vmem>>, vector<4x32x8xf32>
    "tpu.trace_start"() <{level = 10 : i32, message = "hmd,hdn->hmn"}> : () -> ()
    %cst_14 = arith.constant dense<0.000000e+00> : vector<4x8x8xf32>
    %18 = tpu.matmul %11, %17, %cst_14 {dimension_numbers = #tpu.dot_dimension_numbers<[2], [1], [1], [2], [0, 0, 0, 1, 1, 2], [0], [0]>} : vector<4x8x32xf32>, vector<4x32x8xf32>, vector<4x8x8xf32> -> vector<4x8x8xf32>
    "tpu.trace_stop"() : () -> ()
    %c0_15 = arith.constant 0 : index
    %c0_16 = arith.constant 0 : index
    %c0_17 = arith.constant 0 : index
    %19 = vector.load %arg6[%c0_15, %c0_16, %c0_17] : memref<4x32x8xf32, #tpu.memory_space<vmem>>, vector<4x32x8xf32>
    "tpu.trace_start"() <{level = 10 : i32, message = "hmd,hdn->hmn"}> : () -> ()
    %cst_18 = arith.constant dense<0.000000e+00> : vector<4x8x8xf32>
    %20 = tpu.matmul %14, %19, %cst_18 {dimension_numbers = #tpu.dot_dimension_numbers<[2], [1], [1], [2], [0, 0, 0, 1, 1, 2], [0], [0]>} : vector<4x8x32xf32>, vector<4x32x8xf32>, vector<4x8x8xf32> -> vector<4x8x8xf32>
    "tpu.trace_stop"() : () -> ()
    %cst_19 = arith.constant 0.353553385 : f32
    %21 = vector.broadcast %cst_19 : f32 to vector<4x8x8xf32>
    %22 = arith.mulf %16, %21 : vector<4x8x8xf32>
    "tpu.trace_start"() <{level = 10 : i32, message = "zqd,zkd->zqk"}> : () -> ()
    %cst_20 = arith.constant dense<0.000000e+00> : vector<4x8x8xf32>
    %23 = tpu.matmul %22, %18, %cst_20 {dimension_numbers = #tpu.dot_dimension_numbers<[2], [2], [1], [1], [0, 0, 0, 1, 1, 1], [0], [0]>} : vector<4x8x8xf32>, vector<4x8x8xf32>, vector<4x8x8xf32> -> vector<4x8x8xf32>
    "tpu.trace_stop"() : () -> ()
    %cst_21 = arith.constant dense<0xFF800000> : vector<4x8xf32>
    %24 = vector.multi_reduction <maximumf>, %23, %cst_21 [2] : vector<4x8x8xf32> to vector<4x8xf32>
    %25 = vector.shape_cast %24 : vector<4x8xf32> to vector<4x8x1xf32>
    %26 = vector.broadcast %25 : vector<4x8x1xf32> to vector<4x8x8xf32>
    %27 = arith.subf %23, %26 : vector<4x8x8xf32>
    %28 = math.exp %27 : vector<4x8x8xf32>
    %cst_22 = arith.constant dense<0.000000e+00> : vector<4x8xf32>
    %29 = vector.multi_reduction <add>, %28, %cst_22 [2] : vector<4x8x8xf32> to vector<4x8xf32>
    %30 = vector.shape_cast %29 : vector<4x8xf32> to vector<4x8x1xf32>
    %31 = tpu.reciprocal %30 : vector<4x8x1xf32> -> vector<4x8x1xf32>
    %32 = vector.broadcast %31 : vector<4x8x1xf32> to vector<4x8x8xf32>
    %33 = arith.mulf %28, %32 : vector<4x8x8xf32>
    %34 = vector.shape_cast %33 : vector<4x8x8xf32> to vector<1x4x8x8xf32>
    %c0_23 = arith.constant 0 : index
    %c0_24 = arith.constant 0 : index
    %c0_25 = arith.constant 0 : index
    %c0_26 = arith.constant 0 : index
    %35 = vector.load %arg11[%c0_23, %c0_24, %c0_25, %c0_26] : memref<1x4x8x8xf32, #tpu.memory_space<vmem>>, vector<1x4x8x8xf32>
    tpu.vector_store %arg11[%c0_23, %c0_24, %c0_25, %c0_26], %34 {strides = array<i32>} : memref<1x4x8x8xf32, #tpu.memory_space<vmem>>, vector<1x4x8x8xf32>,
    "tpu.trace_start"() <{level = 10 : i32, message = "zqk,zkd->zqd"}> : () -> ()
    %cst_27 = arith.constant dense<0.000000e+00> : vector<4x8x8xf32>
    %36 = tpu.matmul %33, %20, %cst_27 {dimension_numbers = #tpu.dot_dimension_numbers<[2], [1], [1], [2], [0, 0, 0, 1, 1, 2], [0], [0]>} : vector<4x8x8xf32>, vector<4x8x8xf32>, vector<4x8x8xf32> -> vector<4x8x8xf32>
    "tpu.trace_stop"() : () -> ()
    %c0_28 = arith.constant 0 : index
    %c0_29 = arith.constant 0 : index
    %c0_30 = arith.constant 0 : index
    %37 = vector.load %arg7[%c0_28, %c0_29, %c0_30] : memref<4x8x32xf32, #tpu.memory_space<vmem>>, vector<4x8x32xf32>
    "tpu.trace_start"() <{level = 10 : i32, message = "zqd,zdn->zqn"}> : () -> ()
    %cst_31 = arith.constant dense<0.000000e+00> : vector<4x8x32xf32>
    %38 = tpu.matmul %36, %37, %cst_31 {dimension_numbers = #tpu.dot_dimension_numbers<[2], [1], [1], [2], [0, 0, 0, 1, 1, 2], [0], [0]>} : vector<4x8x8xf32>, vector<4x8x32xf32>, vector<4x8x32xf32> -> vector<4x8x32xf32>
    "tpu.trace_stop"() : () -> ()
    %cst_32 = arith.constant dense<0.000000e+00> : vector<8x32xf32>
    %39 = vector.multi_reduction <add>, %38, %cst_32 [0] : vector<4x8x32xf32> to vector<8x32xf32>
    %40 = vector.shape_cast %39 : vector<8x32xf32> to vector<1x8x32xf32>
    %41 = arith.addf %40, %0 : vector<1x8x32xf32>
    %cst_33 = arith.constant dense<0.000000e+00> : vector<1x8xf32>
    %42 = vector.multi_reduction <add>, %41, %cst_33 [2] : vector<1x8x32xf32> to vector<1x8xf32>
    %43 = vector.shape_cast %42 : vector<1x8xf32> to vector<1x8x1xf32>
    %cst_34 = arith.constant 3.200000e+01 : f32
    %44 = vector.broadcast %cst_34 : f32 to vector<1x8x1xf32>
    %45 = arith.divf %43, %44 : vector<1x8x1xf32>
    %46 = vector.broadcast %45 : vector<1x8x1xf32> to vector<1x8x32xf32>
    %47 = arith.subf %41, %46 : vector<1x8x32xf32>
    %48 = arith.mulf %47, %47 : vector<1x8x32xf32>
    %cst_35 = arith.constant dense<0.000000e+00> : vector<1x8xf32>
    %49 = vector.multi_reduction <add>, %48, %cst_35 [2] : vector<1x8x32xf32> to vector<1x8xf32>
    %50 = vector.shape_cast %49 : vector<1x8xf32> to vector<1x8x1xf32>
    %cst_36 = arith.constant 3.200000e+01 : f32
    %51 = vector.broadcast %cst_36 : f32 to vector<1x8x1xf32>
    %52 = arith.divf %50, %51 : vector<1x8x1xf32>
    %53 = vector.broadcast %45 : vector<1x8x1xf32> to vector<1x8x32xf32>
    %54 = arith.subf %41, %53 : vector<1x8x32xf32>
    %cst_37 = arith.constant 9.99999997E-7 : f32
    %55 = vector.broadcast %cst_37 : f32 to vector<1x8x1xf32>
    %56 = arith.addf %52, %55 : vector<1x8x1xf32>
    %57 = math.rsqrt %56 : vector<1x8x1xf32>
    %58 = vector.broadcast %57 : vector<1x8x1xf32> to vector<1x8x32xf32>
    %59 = arith.mulf %54, %58 : vector<1x8x32xf32>
    %c0_38 = arith.constant 0 : index
    %c0_39 = arith.constant 0 : index
    %60 = vector.load %arg8[%c0_38, %c0_39] : memref<1x32xf32, #tpu.memory_space<vmem>>, vector<1x32xf32>
    %61 = vector.shape_cast %60 : vector<1x32xf32> to vector<1x1x32xf32>
    %c0_40 = arith.constant 0 : index
    %c0_41 = arith.constant 0 : index
    %62 = vector.load %arg9[%c0_40, %c0_41] : memref<1x32xf32, #tpu.memory_space<vmem>>, vector<1x32xf32>
    %63 = vector.shape_cast %62 : vector<1x32xf32> to vector<1x1x32xf32>
    %64 = vector.broadcast %61 : vector<1x1x32xf32> to vector<1x8x32xf32>
    %65 = arith.mulf %59, %64 : vector<1x8x32xf32>
    %66 = vector.broadcast %63 : vector<1x1x32xf32> to vector<1x8x32xf32>
    %67 = arith.addf %65, %66 : vector<1x8x32xf32>
    %c0_42 = arith.constant 0 : index
    %c0_43 = arith.constant 0 : index
    %c0_44 = arith.constant 0 : index
    %68 = vector.load %arg10[%c0_42, %c0_43, %c0_44] : memref<1x8x32xf32, #tpu.memory_space<vmem>>, vector<1x8x32xf32>
    tpu.vector_store %arg10[%c0_42, %c0_43, %c0_44], %67 {strides = array<i32>} : memref<1x8x32xf32, #tpu.memory_space<vmem>>, vector<1x8x32xf32>,
    return
  }
  func.func @transform_0(%arg0: i32) -> (i32, i32, i32) {
    %c0_i32 = arith.constant 0 : i32
    %c0_i32_0 = arith.constant 0 : i32
    %c0_i32_1 = arith.constant 0 : i32
    return %arg0, %c0_i32, %c0_i32_0 : i32, i32, i32
  }
  func.func @transform_1(%arg0: i32) -> (i32, i32, i32) {
    %c0_i32 = arith.constant 0 : i32
    %c0_i32_0 = arith.constant 0 : i32
    %c0_i32_1 = arith.constant 0 : i32
    return %arg0, %c0_i32, %c0_i32_0 : i32, i32, i32
  }
  func.func @transform_2(%arg0: i32) -> (i32, i32, i32) {
    %c0_i32 = arith.constant 0 : i32
    %c0_i32_0 = arith.constant 0 : i32
    %c0_i32_1 = arith.constant 0 : i32
    return %arg0, %c0_i32, %c0_i32_0 : i32, i32, i32
  }
  func.func @transform_3(%arg0: i32) -> (i32, i32, i32) {
    %c0_i32 = arith.constant 0 : i32
    %c0_i32_0 = arith.constant 0 : i32
    %c0_i32_1 = arith.constant 0 : i32
    %c0_i32_2 = arith.constant 0 : i32
    return %c0_i32, %c0_i32_0, %c0_i32_1 : i32, i32, i32
  }
  func.func @transform_4(%arg0: i32) -> (i32, i32, i32) {
    %c0_i32 = arith.constant 0 : i32
    %c0_i32_0 = arith.constant 0 : i32
    %c0_i32_1 = arith.constant 0 : i32
    %c0_i32_2 = arith.constant 0 : i32
    return %c0_i32, %c0_i32_0, %c0_i32_1 : i32, i32, i32
  }
  func.func @transform_5(%arg0: i32) -> (i32, i32, i32) {
    %c0_i32 = arith.constant 0 : i32
    %c0_i32_0 = arith.constant 0 : i32
    %c0_i32_1 = arith.constant 0 : i32
    %c0_i32_2 = arith.constant 0 : i32
    return %c0_i32, %c0_i32_0, %c0_i32_1 : i32, i32, i32
  }
  func.func @transform_6(%arg0: i32) -> (i32, i32, i32) {
    %c0_i32 = arith.constant 0 : i32
    %c0_i32_0 = arith.constant 0 : i32
    %c0_i32_1 = arith.constant 0 : i32
    %c0_i32_2 = arith.constant 0 : i32
    return %c0_i32, %c0_i32_0, %c0_i32_1 : i32, i32, i32
  }
  func.func @transform_7(%arg0: i32) -> (i32, i32) {
    %c0_i32 = arith.constant 0 : i32
    %c0_i32_0 = arith.constant 0 : i32
    %c0_i32_1 = arith.constant 0 : i32
    return %c0_i32, %c0_i32_0 : i32, i32
  }
  func.func @transform_8(%arg0: i32) -> (i32, i32) {
    %c0_i32 = arith.constant 0 : i32
    %c0_i32_0 = arith.constant 0 : i32
    %c0_i32_1 = arith.constant 0 : i32
    return %c0_i32, %c0_i32_0 : i32, i32
  }
  func.func @transform_9(%arg0: i32) -> (i32, i32, i32) {
    %c0_i32 = arith.constant 0 : i32
    %c0_i32_0 = arith.constant 0 : i32
    %c0_i32_1 = arith.constant 0 : i32
    return %arg0, %c0_i32, %c0_i32_0 : i32, i32, i32
  }
  func.func @transform_10(%arg0: i32) -> (i32, i32, i32, i32) {
    %c0_i32 = arith.constant 0 : i32
    %c0_i32_0 = arith.constant 0 : i32
    %c0_i32_1 = arith.constant 0 : i32
    %c0_i32_2 = arith.constant 0 : i32
    return %arg0, %c0_i32, %c0_i32_0, %c0_i32_1 : i32, i32, i32, i32
  }
}

</mosaic_0001>

<llo_original>
// kernel: tpu_custom_call.1
$region0: #{tpu_custom_call.1}
  #allocation0 [shape = 'u32[]', space=smem, size = 0x4, offset = 0x4, fixed_abs, tag = 'smem constant byte address 0x4 - core index']
  #allocation1 [shape = 'u32[72,128]{1,0:T(1,128)}', space=vmem, size = 0x9000, scoped, tag = 'internal scratch']
  %s0 = inlined_call_operand.vmem [shape: f32[2,8,32], index: 0, kind: input, shape index: {}]
  %s1 = inlined_call_operand.vmem [shape: f32[2,8,32], index: 1, kind: input, shape index: {}]
  %s2 = inlined_call_operand.vmem [shape: f32[2,8,32], index: 2, kind: input, shape index: {}]
  %s3 = inlined_call_operand.vmem [shape: f32[4,32,8], index: 3, kind: input, shape index: {}]
  %s4 = inlined_call_operand.vmem [shape: f32[4,32,8], index: 4, kind: input, shape index: {}]
  %s5 = inlined_call_operand.vmem [shape: f32[4,32,8], index: 5, kind: input, shape index: {}]
  %s6 = inlined_call_operand.vmem [shape: f32[4,8,32], index: 6, kind: input, shape index: {}]
  %s7 = inlined_call_operand.vmem [shape: f32[1,32], index: 7, kind: input, shape index: {}]
  %s8 = inlined_call_operand.vmem [shape: f32[1,32], index: 8, kind: input, shape index: {}]
  %s9 = inlined_call_operand.hbm [shape: f32[2,8,32], index: 9, kind: output, shape index: {0}]
  %s10 = inlined_call_operand.hbm [shape: f32[2,4,8,8], index: 10, kind: output, shape index: {1}]
  %11 = xla_tuple %s9, %s10
  %s12 = sld [smem:[#allocation0]]
  $region77: #{tpu_custom_call.1} parent=0
    _
  %s14 = ssub.s32 1, %s12
  %s15 = scalar_select 0, %s14, %s12
  $region1: #{tpu_custom_call.1} parent=0
    #allocation2 [shape = 'u8[8192]{0}', space=vmem, size = 0x2000, scoped, tag = 'output window, operand 0']
    #allocation3 [shape = 's32[2]{0}', space=sflag, size = 0x8, scoped, tag = 'scoped memory for tpu_custom_call.1']
    #allocation4 [shape = 'u8[32768]{0}', space=vmem, size = 0x8000, scoped, tag = 'output window, operand 1']
    #allocation5 [shape = 's32[2]{0}', space=sflag, size = 0x8, scoped, tag = 'scoped memory for tpu_custom_call.1']
    %16 = vsyncpa [#allocation3], 0
    %s17 = scalar_lea.sflag [#allocation3], 1
    %18 = vsyncpa %s17, 0
    %19 = vsyncpa [#allocation5], 0
    %s20 = scalar_lea.sflag [#allocation5], 1
    %21 = vsyncpa %s20, 0
    loop: start=0, step=1, limit=4
    $region2: #{tpu_custom_call.1} parent=1 // loop_pre_header
      _
    $region3: #{tpu_custom_call.1} parent=1 // loop_header
      %s23 = sphi 0, %s27
      %p24 = scmp.ge.s32.totalorder %s23, 4
      %s33 = sphi 0, %s35
      %s36 = sphi 0, %s33
      %s37 = sphi 0, %s36
      %s53 = sphi 0, %s37
      %s59 = sphi 0, %s61
      %s62 = sphi 0, %s59
      %s63 = sphi 0, %s62
      %s79 = sphi 0, %s63
      %s85 = sphi 0, %s87
      %s88 = sphi 0, %s85
      %s89 = sphi 0, %s88
      %s105 = sphi 0, %s89
      %s109 = sphi 0, %s109
      %s111 = sphi 0, %s109
      %s112 = sphi 0, %s111
      %s126 = sphi 0, %s112
      %s130 = sphi 0, %s130
      %s132 = sphi 0, %s130
      %s133 = sphi 0, %s132
      %s147 = sphi 0, %s133
      %s151 = sphi 0, %s151
      %s153 = sphi 0, %s151
      %s154 = sphi 0, %s153
      %s168 = sphi 0, %s154
      %s172 = sphi 0, %s172
      %s174 = sphi 0, %s172
      %s175 = sphi 0, %s174
      %s189 = sphi 0, %s175
      %s193 = sphi 0, %s193
      %s195 = sphi 0, %s193
      %s196 = sphi 0, %s195
      %s210 = sphi 0, %s196
      %s214 = sphi 0, %s214
      %s216 = sphi 0, %s214
      %s217 = sphi 0, %s216
      %s231 = sphi 0, %s217
      %s237 = sphi 0, %s239
      %s240 = sphi 0, %s237
      %s241 = sphi 0, %s240
      %s257 = sphi 0, %s241
      %s263 = sphi 0, %s265
      %s266 = sphi 0, %s263
      %s267 = sphi 0, %s266
      %s283 = sphi 0, %s267
    $region4: #{tpu_custom_call.1} parent=1 // loop_header_branch
      %26 = sbr.rel (%p24) target = $region8
    $region5: #{tpu_custom_call.1} parent=1 // loop_body
      %s28 = ssub.s32 %s23, 1
      %s29 = ssub.s32 %s23, 2
      %s30 = sadd.s32 %s23, 1
      %s31 = ssub.s32 %s23, %s30
      %p32 = scmp.eq.s32.totalorder %s31, 0
      %s34 = sadd.s32 %s33, 1
      %s35 = scalar_select %p32, %s33, %s34
      %p38 = pneg %p32
      %p39 = scmp.eq.s32.totalorder %s23, 1
      %p40 = por %p38, %p39
      %p41 = scmp.ne.s32.totalorder %s33, %s36
      %p42 = scmp.eq.s32.totalorder %s23, 0
      %p43 = por %p41, %p42
      %p44 = scmp.ne.s32.totalorder %s33, %s36
      %p45 = scmp.eq.s32.totalorder %s28, 1
      %p46 = por %p44, %p45
      %p47 = scmp.ne.s32.totalorder %s36, %s37
      %p48 = scmp.eq.s32.totalorder %s28, 0
      %p49 = por %p47, %p48
      %p50 = scmp.ne.s32.totalorder %s36, %s37
      %p51 = scmp.eq.s32.totalorder %s29, 1
      %p52 = por %p50, %p51
      %p54 = scmp.ne.s32.totalorder %s37, %s53
      %p55 = scmp.eq.s32.totalorder %s29, 0
      %p56 = por %p54, %p55
      %s57 = ssub.s32 %s23, %s30
      %p58 = scmp.eq.s32.totalorder %s57, 0
      %s60 = sadd.s32 %s59, 1
      %s61 = scalar_select %p58, %s59, %s60
      %p64 = pneg %p58
      %p65 = scmp.eq.s32.totalorder %s23, 1
      %p66 = por %p64, %p65
      %p67 = scmp.ne.s32.totalorder %s59, %s62
      %p68 = scmp.eq.s32.totalorder %s23, 0
      %p69 = por %p67, %p68
      %p70 = scmp.ne.s32.totalorder %s59, %s62
      %p71 = scmp.eq.s32.totalorder %s28, 1
      %p72 = por %p70, %p71
      %p73 = scmp.ne.s32.totalorder %s62, %s63
      %p74 = scmp.eq.s32.totalorder %s28, 0
      %p75 = por %p73, %p74
      %p76 = scmp.ne.s32.totalorder %s62, %s63
      %p77 = scmp.eq.s32.totalorder %s29, 1
      %p78 = por %p76, %p77
      %p80 = scmp.ne.s32.totalorder %s63, %s79
      %p81 = scmp.eq.s32.totalorder %s29, 0
      %p82 = por %p80, %p81
      %s83 = ssub.s32 %s23, %s30
      %p84 = scmp.eq.s32.totalorder %s83, 0
      %s86 = sadd.s32 %s85, 1
      %s87 = scalar_select %p84, %s85, %s86
      %p90 = pneg %p84
      %p91 = scmp.eq.s32.totalorder %s23, 1
      %p92 = por %p90, %p91
      %p93 = scmp.ne.s32.totalorder %s85, %s88
      %p94 = scmp.eq.s32.totalorder %s23, 0
      %p95 = por %p93, %p94
      %p96 = scmp.ne.s32.totalorder %s85, %s88
      %p97 = scmp.eq.s32.totalorder %s28, 1
      %p98 = por %p96, %p97
      %p99 = scmp.ne.s32.totalorder %s88, %s89
      %p100 = scmp.eq.s32.totalorder %s28, 0
      %p101 = por %p99, %p100
      %p102 = scmp.ne.s32.totalorder %s88, %s89
      %p103 = scmp.eq.s32.totalorder %s29, 1
      %p104 = por %p102, %p103
      %p106 = scmp.ne.s32.totalorder %s89, %s105
      %p107 = scmp.eq.s32.totalorder %s29, 0
      %p108 = por %p106, %p107
      %s110 = sadd.s32 %s109, 1
      %p113 = scmp.eq.s32.totalorder %s23, 1
      %p114 = scmp.ne.s32.totalorder %s109, %s111
      %p115 = scmp.eq.s32.totalorder %s23, 0
      %p116 = por %p114, %p115
      %p117 = scmp.ne.s32.totalorder %s109, %s111
      %p118 = scmp.eq.s32.totalorder %s28, 1
      %p119 = por %p117, %p118
      %p120 = scmp.ne.s32.totalorder %s111, %s112
      %p121 = scmp.eq.s32.totalorder %s28, 0
      %p122 = por %p120, %p121
      %p123 = scmp.ne.s32.totalorder %s111, %s112
      %p124 = scmp.eq.s32.totalorder %s29, 1
      %p125 = por %p123, %p124
      %p127 = scmp.ne.s32.totalorder %s112, %s126
      %p128 = scmp.eq.s32.totalorder %s29, 0
      %p129 = por %p127, %p128
      %s131 = sadd.s32 %s130, 1
      %p134 = scmp.eq.s32.totalorder %s23, 1
      %p135 = scmp.ne.s32.totalorder %s130, %s132
      %p136 = scmp.eq.s32.totalorder %s23, 0
      %p137 = por %p135, %p136
      %p138 = scmp.ne.s32.totalorder %s130, %s132
      %p139 = scmp.eq.s32.totalorder %s28, 1
      %p140 = por %p138, %p139
      %p141 = scmp.ne.s32.totalorder %s132, %s133
      %p142 = scmp.eq.s32.totalorder %s28, 0
      %p143 = por %p141, %p142
      %p144 = scmp.ne.s32.totalorder %s132, %s133
      %p145 = scmp.eq.s32.totalorder %s29, 1
      %p146 = por %p144, %p145
      %p148 = scmp.ne.s32.totalorder %s133, %s147
      %p149 = scmp.eq.s32.totalorder %s29, 0
      %p150 = por %p148, %p149
      %s152 = sadd.s32 %s151, 1
      %p155 = scmp.eq.s32.totalorder %s23, 1
      %p156 = scmp.ne.s32.totalorder %s151, %s153
      %p157 = scmp.eq.s32.totalorder %s23, 0
      %p158 = por %p156, %p157
      %p159 = scmp.ne.s32.totalorder %s151, %s153
      %p160 = scmp.eq.s32.totalorder %s28, 1
      %p161 = por %p159, %p160
      %p162 = scmp.ne.s32.totalorder %s153, %s154
      %p163 = scmp.eq.s32.totalorder %s28, 0
      %p164 = por %p162, %p163
      %p165 = scmp.ne.s32.totalorder %s153, %s154
      %p166 = scmp.eq.s32.totalorder %s29, 1
      %p167 = por %p165, %p166
      %p169 = scmp.ne.s32.totalorder %s154, %s168
      %p170 = scmp.eq.s32.totalorder %s29, 0
      %p171 = por %p169, %p170
      %s173 = sadd.s32 %s172, 1
      %p176 = scmp.eq.s32.totalorder %s23, 1
      %p177 = scmp.ne.s32.totalorder %s172, %s174
      %p178 = scmp.eq.s32.totalorder %s23, 0
      %p179 = por %p177, %p178
      %p180 = scmp.ne.s32.totalorder %s172, %s174
      %p181 = scmp.eq.s32.totalorder %s28, 1
      %p182 = por %p180, %p181
      %p183 = scmp.ne.s32.totalorder %s174, %s175
      %p184 = scmp.eq.s32.totalorder %s28, 0
      %p185 = por %p183, %p184
      %p186 = scmp.ne.s32.totalorder %s174, %s175
      %p187 = scmp.eq.s32.totalorder %s29, 1
      %p188 = por %p186, %p187
      %p190 = scmp.ne.s32.totalorder %s175, %s189
      %p191 = scmp.eq.s32.totalorder %s29, 0
      %p192 = por %p190, %p191
      %s194 = sadd.s32 %s193, 1
      %p197 = scmp.eq.s32.totalorder %s23, 1
      %p198 = scmp.ne.s32.totalorder %s193, %s195
      %p199 = scmp.eq.s32.totalorder %s23, 0
      %p200 = por %p198, %p199
      %p201 = scmp.ne.s32.totalorder %s193, %s195
      %p202 = scmp.eq.s32.totalorder %s28, 1
      %p203 = por %p201, %p202
      %p204 = scmp.ne.s32.totalorder %s195, %s196
      %p205 = scmp.eq.s32.totalorder %s28, 0
      %p206 = por %p204, %p205
      %p207 = scmp.ne.s32.totalorder %s195, %s196
      %p208 = scmp.eq.s32.totalorder %s29, 1
      %p209 = por %p207, %p208
      %p211 = scmp.ne.s32.totalorder %s196, %s210
      %p212 = scmp.eq.s32.totalorder %s29, 0
      %p213 = por %p211, %p212
      %s215 = sadd.s32 %s214, 1
      %p218 = scmp.eq.s32.totalorder %s23, 1
      %p219 = scmp.ne.s32.totalorder %s214, %s216
      %p220 = scmp.eq.s32.totalorder %s23, 0
      %p221 = por %p219, %p220
      %p222 = scmp.ne.s32.totalorder %s214, %s216
      %p223 = scmp.eq.s32.totalorder %s28, 1
      %p224 = por %p222, %p223
      %p225 = scmp.ne.s32.totalorder %s216, %s217
      %p226 = scmp.eq.s32.totalorder %s28, 0
      %p227 = por %p225, %p226
      %p228 = scmp.ne.s32.totalorder %s216, %s217
      %p229 = scmp.eq.s32.totalorder %s29, 1
      %p230 = por %p228, %p229
      %p232 = scmp.ne.s32.totalorder %s217, %s231
      %p233 = scmp.eq.s32.totalorder %s29, 0
      %p234 = por %p232, %p233
      %s235 = ssub.s32 %s23, %s30
      %p236 = scmp.eq.s32.totalorder %s235, 0
      %s238 = sadd.s32 %s237, 1
      %s239 = scalar_select %p236, %s237, %s238
      %p242 = pneg %p236
      %p243 = scmp.eq.s32.totalorder %s23, 1
      %p244 = por %p242, %p243
      %p245 = scmp.ne.s32.totalorder %s237, %s240
      %p246 = scmp.eq.s32.totalorder %s23, 0
      %p247 = por %p245, %p246
      %p248 = scmp.ne.s32.totalorder %s237, %s240
      %p249 = scmp.eq.s32.totalorder %s28, 1
      %p250 = por %p248, %p249
      %p251 = scmp.ne.s32.totalorder %s240, %s241
      %p252 = scmp.eq.s32.totalorder %s28, 0
      %p253 = por %p251, %p252
      %p254 = scmp.ne.s32.totalorder %s240, %s241
      %p255 = scmp.eq.s32.totalorder %s29, 1
      %p256 = por %p254, %p255
      %p258 = scmp.ne.s32.totalorder %s241, %s257
      %p259 = scmp.eq.s32.totalorder %s29, 0
      %p260 = por %p258, %p259
      %s261 = ssub.s32 %s23, %s30
      %p262 = scmp.eq.s32.totalorder %s261, 0
      %s264 = sadd.s32 %s263, 1
      %s265 = scalar_select %p262, %s263, %s264
      %p268 = pneg %p262
      %p269 = scmp.eq.s32.totalorder %s23, 1
      %p270 = por %p268, %p269
      %p271 = scmp.ne.s32.totalorder %s263, %s266
      %p272 = scmp.eq.s32.totalorder %s23, 0
      %p273 = por %p271, %p272
      %p274 = scmp.ne.s32.totalorder %s263, %s266
      %p275 = scmp.eq.s32.totalorder %s28, 1
      %p276 = por %p274, %p275
      %p277 = scmp.ne.s32.totalorder %s266, %s267
      %p278 = scmp.eq.s32.totalorder %s28, 0
      %p279 = por %p277, %p278
      %p280 = scmp.ne.s32.totalorder %s266, %s267
      %p281 = scmp.eq.s32.totalorder %s29, 1
      %p282 = por %p280, %p281
      %p284 = scmp.ne.s32.totalorder %s267, %s283
      %p285 = scmp.eq.s32.totalorder %s29, 0
      %p286 = por %p284, %p285
      %p287 = scmp.le.s32.totalorder 1, %s23
      %p288 = scmp.lt.s32.totalorder %s23, 3
      %p289 = pnand %p287, %p288
      %p290 = pneg %p289
      // Predicated region
      $region9: #{tpu_custom_call.1} parent=5 // pred_check
        _
      $region10: #{tpu_custom_call.1} parent=5 // pred_check_branch
        %292 = sbr.rel (%p289) target = $region12
      $region11: #{tpu_custom_call.1} parent=5 // pred_region
        %s293 = ssub.s32 %s23, 1
        // Predicated region
        $region13: #{tpu_custom_call.1} parent=11 // pred_check
          %p294 = pneg %p122
        $region14: #{tpu_custom_call.1} parent=11 // pred_check_branch
          %296 = sbr.rel (%p294) target = $region16
        $region15: #{tpu_custom_call.1} parent=11 // pred_region
          _
        $region16: #{tpu_custom_call.1} parent=11 // pred_fallthru
          _
        // Predicated region
        $region17: #{tpu_custom_call.1} parent=11 // pred_check
          %p297 = pneg %p143
        $region18: #{tpu_custom_call.1} parent=11 // pred_check_branch
          %299 = sbr.rel (%p297) target = $region20
        $region19: #{tpu_custom_call.1} parent=11 // pred_region
          _
        $region20: #{tpu_custom_call.1} parent=11 // pred_fallthru
          _
        // Predicated region
        $region21: #{tpu_custom_call.1} parent=11 // pred_check
          %p300 = pneg %p164
        $region22: #{tpu_custom_call.1} parent=11 // pred_check_branch
          %302 = sbr.rel (%p300) target = $region24
        $region23: #{tpu_custom_call.1} parent=11 // pred_region
          _
        $region24: #{tpu_custom_call.1} parent=11 // pred_fallthru
          _
        // Predicated region
        $region25: #{tpu_custom_call.1} parent=11 // pred_check
          %p303 = pneg %p185
        $region26: #{tpu_custom_call.1} parent=11 // pred_check_branch
          %305 = sbr.rel (%p303) target = $region28
        $region27: #{tpu_custom_call.1} parent=11 // pred_region
          _
        $region28: #{tpu_custom_call.1} parent=11 // pred_fallthru
          _
        // Predicated region
        $region29: #{tpu_custom_call.1} parent=11 // pred_check
          %p306 = pneg %p206
        $region30: #{tpu_custom_call.1} parent=11 // pred_check_branch
          %308 = sbr.rel (%p306) target = $region32
        $region31: #{tpu_custom_call.1} parent=11 // pred_region
          _
        $region32: #{tpu_custom_call.1} parent=11 // pred_fallthru
          _
        // Predicated region
        $region33: #{tpu_custom_call.1} parent=11 // pred_check
          %p309 = pneg %p227
        $region34: #{tpu_custom_call.1} parent=11 // pred_check_branch
          %311 = sbr.rel (%p309) target = $region36
        $region35: #{tpu_custom_call.1} parent=11 // pred_region
          _
        $region36: #{tpu_custom_call.1} parent=11 // pred_fallthru
          _
      $region12: #{tpu_custom_call.1} parent=5 // pred_fallthru
        _
      %p312 = scmp.lt.s32.totalorder %s23, 2
      // Predicated region
      $region37: #{tpu_custom_call.1} parent=5 // pred_check
        %p313 = pneg %p312
      $region38: #{tpu_custom_call.1} parent=5 // pred_check_branch
        %315 = sbr.rel (%p313) target = $region40
      $region39: #{tpu_custom_call.1} parent=5 // pred_region
        // Predicated region
        $region41: #{tpu_custom_call.1} parent=39 // pred_check
          %p316 = pneg %p43
        $region42: #{tpu_custom_call.1} parent=39 // pred_check_branch
          %318 = sbr.rel (%p316) target = $region44
        $region43: #{tpu_custom_call.1} parent=39 // pred_region
          %p319 = scmp.lt.s32.totalorder %s23, 1
          %s320 = scalar_select %p319, %s23, 1
          %s321 = smul.addr %s320, 8
          %s322 = scalar_lea.vmem %s0, %s321
        $region44: #{tpu_custom_call.1} parent=39 // pred_fallthru
          _
        // Predicated region
        $region45: #{tpu_custom_call.1} parent=39 // pred_check
          %p323 = pneg %p69
        $region46: #{tpu_custom_call.1} parent=39 // pred_check_branch
          %325 = sbr.rel (%p323) target = $region48
        $region47: #{tpu_custom_call.1} parent=39 // pred_region
          %p326 = scmp.lt.s32.totalorder %s23, 1
          %s327 = scalar_select %p326, %s23, 1
          %s328 = smul.addr %s327, 8
          %s329 = scalar_lea.vmem %s1, %s328
        $region48: #{tpu_custom_call.1} parent=39 // pred_fallthru
          _
        // Predicated region
        $region49: #{tpu_custom_call.1} parent=39 // pred_check
          %p330 = pneg %p95
        $region50: #{tpu_custom_call.1} parent=39 // pred_check_branch
          %332 = sbr.rel (%p330) target = $region52
        $region51: #{tpu_custom_call.1} parent=39 // pred_region
          %p333 = scmp.lt.s32.totalorder %s23, 1
          %s334 = scalar_select %p333, %s23, 1
          %s335 = smul.addr %s334, 8
          %s336 = scalar_lea.vmem %s2, %s335
        $region52: #{tpu_custom_call.1} parent=39 // pred_fallthru
          _
      $region40: #{tpu_custom_call.1} parent=5 // pred_fallthru
        _
      %p337 = scmp.le.s32.totalorder 1, %s23
      %p338 = scmp.lt.s32.totalorder %s23, 3
      %p339 = pnand %p337, %p338
      %p340 = pneg %p339
      // Predicated region
      $region53: #{tpu_custom_call.1} parent=5 // pred_check
        _
      $region54: #{tpu_custom_call.1} parent=5 // pred_check_branch
        %342 = sbr.rel (%p339) target = $region56
      $region55: #{tpu_custom_call.1} parent=5 // pred_region
        %s343 = ssub.s32 %s23, 1
        %p344 = scmp.lt.s32.totalorder %s28, 1
        %s345 = scalar_select %p344, %s28, 1
        %s346 = smul.addr %s345, 8
        %s347 = scalar_lea.vmem %s0, %s346
        %p348 = pneg %p49
        %p349 = pneg %p46
        %p350 = scmp.lt.s32.totalorder %s28, 1
        %s351 = scalar_select %p350, %s28, 1
        %s352 = smul.addr %s351, 8
        %s353 = scalar_lea.vmem %s1, %s352
        %p354 = pneg %p75
        %p355 = pneg %p72
        %p356 = scmp.lt.s32.totalorder %s28, 1
        %s357 = scalar_select %p356, %s28, 1
        %s358 = smul.addr %s357, 8
        %s359 = scalar_lea.vmem %s2, %s358
        %p360 = pneg %p101
        %p361 = pneg %p98
        %p362 = pneg %p122
        %p363 = pneg %p119
        %p364 = pneg %p143
        %p365 = pneg %p140
        %p366 = pneg %p164
        %p367 = pneg %p161
        %p368 = pneg %p185
        %p369 = pneg %p182
        %p370 = pneg %p206
        %p371 = pneg %p203
        %p372 = pneg %p227
        %p373 = pneg %p224
        %p374 = pneg %p253
        %p375 = pneg %p250
        %s376 = sand.u32 %s240, 1
        %s377 = scalar_lea.sflag [#allocation3], %s376
        %s378 = sand.u32 %s240, 1
        %s379 = smul.addr %s378, 8
        %s380 = scalar_lea.vmem [#allocation2], %s379
        %p381 = pneg %p279
        %p382 = pneg %p276
        %s383 = sand.u32 %s266, 1
        %s384 = scalar_lea.sflag [#allocation5], %s383
        %s385 = sand.u32 %s266, 1
        %s386 = smul.addr %s385, 32
        %s387 = scalar_lea.vmem [#allocation4], %s386
        %p388 = scmp.lt.s32.totalorder %s28, 1
        %s389 = scalar_select %p388, %s28, 1
        %s390 = smul.addr %s389, 8
        %s391 = scalar_lea.vmem %s0, %s390
        %p392 = scmp.lt.s32.totalorder %s28, 1
        %s393 = scalar_select %p392, %s28, 1
        %s394 = smul.addr %s393, 8
        %s395 = scalar_lea.vmem %s1, %s394
        %p396 = scmp.lt.s32.totalorder %s28, 1
        %s397 = scalar_select %p396, %s28, 1
        %s398 = smul.addr %s397, 8
        %s399 = scalar_lea.vmem %s2, %s398
        %v400 = vld [vmem:[%s391] sm:$0xff]
        %v401 = vld [vmem:[%s395] sm:$0xff]
        %v402 = vld [vmem:[%s399] sm:$0xff]
        %v403 = vld [vmem:[%s3] sm:$0xff]
        %v404 = vld [vmem:[%s3 + $0x8] sm:$0xff]
        %v405 = vld [vmem:[%s3 + $0x10] sm:$0xff]
        %v406 = vld [vmem:[%s3 + $0x18] sm:$0xff]
        %v407 = vld [vmem:[%s3 + $0x20] sm:$0xff]
        %v408 = vld [vmem:[%s3 + $0x28] sm:$0xff]
        %v409 = vld [vmem:[%s3 + $0x30] sm:$0xff]
        %v410 = vld [vmem:[%s3 + $0x38] sm:$0xff]
        %v411 = vld [vmem:[%s3 + $0x40] sm:$0xff]
        %v412 = vld [vmem:[%s3 + $0x48] sm:$0xff]
        %v413 = vld [vmem:[%s3 + $0x50] sm:$0xff]
        %v414 = vld [vmem:[%s3 + $0x58] sm:$0xff]
        %v415 = vld [vmem:[%s3 + $0x60] sm:$0xff]
        %v416 = vld [vmem:[%s3 + $0x68] sm:$0xff]
        %v417 = vld [vmem:[%s3 + $0x70] sm:$0xff]
        %v418 = vld [vmem:[%s3 + $0x78] sm:$0xff]
        %vm419 = vcmask 261120
        %v421 = vsel %vm419, %v400, 0
        %423 = vmatpush.msra.mxu0 0.0
        %424 = vmatpush.msra.mxu0 0.0
        %425 = vmatpush.msra.mxu0 0.0
        %426 = vmatpush.msra.mxu0 0.0
        %427 = vmatpush.msra.mxu0 0.0
        %428 = vmatpush.msra.mxu0 0.0
        %429 = vmatpush.msra.mxu0 0.0
        %430 = vmatpush.msra.mxu0 0.0
        %431 = vmatpush.msra.mxu0 0.0
        %432 = vmatpush.msra.mxu0 0.0
        %433 = vmatpush.msra.mxu0 0.0
        %434 = vmatpush.msra.mxu0 0.0
        %435 = vmatpush.msra.mxu0 %v406
        %436 = vmatpush.msra.mxu0 %v405
        %437 = vmatpush.msra.mxu0 %v404
        %438 = vmatpush.msra.mxu0 %v403
        %439 = vmatmul.f32.gmra.mxu0 %v421
        %v440 = vpop.f32.mrf.mxu0
        %v441 = vadd.f32 0.0, %v440
        %442 = vdwg.mxu0
        %443 = vmatpush.msra.mxu0 0.0
        %444 = vmatpush.msra.mxu0 0.0
        %445 = vmatpush.msra.mxu0 0.0
        %446 = vmatpush.msra.mxu0 0.0
        %447 = vmatpush.msra.mxu0 0.0
        %448 = vmatpush.msra.mxu0 0.0
        %449 = vmatpush.msra.mxu0 0.0
        %450 = vmatpush.msra.mxu0 0.0
        %451 = vmatpush.msra.mxu0 0.0
        %452 = vmatpush.msra.mxu0 0.0
        %453 = vmatpush.msra.mxu0 0.0
        %454 = vmatpush.msra.mxu0 0.0
        %455 = vmatpush.msra.mxu0 %v410
        %456 = vmatpush.msra.mxu0 %v409
        %457 = vmatpush.msra.mxu0 %v408
        %458 = vmatpush.msra.mxu0 %v407
        %459 = vmatmul.f32.gmra.mxu0 %v421
        %v460 = vpop.f32.mrf.mxu0
        %v461 = vadd.f32 0.0, %v460
        %462 = vdwg.mxu0
        %463 = vmatpush.msra.mxu0 0.0
        %464 = vmatpush.msra.mxu0 0.0
        %465 = vmatpush.msra.mxu0 0.0
        %466 = vmatpush.msra.mxu0 0.0
        %467 = vmatpush.msra.mxu0 0.0
        %468 = vmatpush.msra.mxu0 0.0
        %469 = vmatpush.msra.mxu0 0.0
        %470 = vmatpush.msra.mxu0 0.0
        %471 = vmatpush.msra.mxu0 0.0
        %472 = vmatpush.msra.mxu0 0.0
        %473 = vmatpush.msra.mxu0 0.0
        %474 = vmatpush.msra.mxu0 0.0
        %475 = vmatpush.msra.mxu0 %v414
        %476 = vmatpush.msra.mxu0 %v413
        %477 = vmatpush.msra.mxu0 %v412
        %478 = vmatpush.msra.mxu0 %v411
        %479 = vmatmul.f32.gmra.mxu0 %v421
        %v480 = vpop.f32.mrf.mxu0
        %v481 = vadd.f32 0.0, %v480
        %482 = vdwg.mxu0
        %483 = vmatpush.msra.mxu0 0.0
        %484 = vmatpush.msra.mxu0 0.0
        %485 = vmatpush.msra.mxu0 0.0
        %486 = vmatpush.msra.mxu0 0.0
        %487 = vmatpush.msra.mxu0 0.0
        %488 = vmatpush.msra.mxu0 0.0
        %489 = vmatpush.msra.mxu0 0.0
        %490 = vmatpush.msra.mxu0 0.0
        %491 = vmatpush.msra.mxu0 0.0
        %492 = vmatpush.msra.mxu0 0.0
        %493 = vmatpush.msra.mxu0 0.0
        %494 = vmatpush.msra.mxu0 0.0
        %495 = vmatpush.msra.mxu0 %v418
        %496 = vmatpush.msra.mxu0 %v417
        %497 = vmatpush.msra.mxu0 %v416
        %498 = vmatpush.msra.mxu0 %v415
        %499 = vmatmul.f32.gmra.mxu0 %v421
        %v500 = vpop.f32.mrf.mxu0
        %v501 = vadd.f32 0.0, %v500
        %502 = vdwg.mxu0
        %v503 = vld [vmem:[%s4] sm:$0xff]
        %v504 = vld [vmem:[%s4 + $0x8] sm:$0xff]
        %v505 = vld [vmem:[%s4 + $0x10] sm:$0xff]
        %v506 = vld [vmem:[%s4 + $0x18] sm:$0xff]
        %v507 = vld [vmem:[%s4 + $0x20] sm:$0xff]
        %v508 = vld [vmem:[%s4 + $0x28] sm:$0xff]
        %v509 = vld [vmem:[%s4 + $0x30] sm:$0xff]
        %v510 = vld [vmem:[%s4 + $0x38] sm:$0xff]
        %v511 = vld [vmem:[%s4 + $0x40] sm:$0xff]
        %v512 = vld [vmem:[%s4 + $0x48] sm:$0xff]
        %v513 = vld [vmem:[%s4 + $0x50] sm:$0xff]
        %v514 = vld [vmem:[%s4 + $0x58] sm:$0xff]
        %v515 = vld [vmem:[%s4 + $0x60] sm:$0xff]
        %v516 = vld [vmem:[%s4 + $0x68] sm:$0xff]
        %v517 = vld [vmem:[%s4 + $0x70] sm:$0xff]
        %v518 = vld [vmem:[%s4 + $0x78] sm:$0xff]
        %v520 = vsel %vm419, %v401, 0
        %522 = vmatpush.msra.mxu0 0.0
        %523 = vmatpush.msra.mxu0 0.0
        %524 = vmatpush.msra.mxu0 0.0
        %525 = vmatpush.msra.mxu0 0.0
        %526 = vmatpush.msra.mxu0 0.0
        %527 = vmatpush.msra.mxu0 0.0
        %528 = vmatpush.msra.mxu0 0.0
        %529 = vmatpush.msra.mxu0 0.0
        %530 = vmatpush.msra.mxu0 0.0
        %531 = vmatpush.msra.mxu0 0.0
        %532 = vmatpush.msra.mxu0 0.0
        %533 = vmatpush.msra.mxu0 0.0
        %534 = vmatpush.msra.mxu0 %v506
        %535 = vmatpush.msra.mxu0 %v505
        %536 = vmatpush.msra.mxu0 %v504
        %537 = vmatpush.msra.mxu0 %v503
        %538 = vmatmul.f32.gmra.mxu0 %v520
        %v539 = vpop.f32.mrf.mxu0
        %v540 = vadd.f32 0.0, %v539
        %541 = vdwg.mxu0
        %542 = vmatpush.msra.mxu0 0.0
        %543 = vmatpush.msra.mxu0 0.0
        %544 = vmatpush.msra.mxu0 0.0
        %545 = vmatpush.msra.mxu0 0.0
        %546 = vmatpush.msra.mxu0 0.0
        %547 = vmatpush.msra.mxu0 0.0
        %548 = vmatpush.msra.mxu0 0.0
        %549 = vmatpush.msra.mxu0 0.0
        %550 = vmatpush.msra.mxu0 0.0
        %551 = vmatpush.msra.mxu0 0.0
        %552 = vmatpush.msra.mxu0 0.0
        %553 = vmatpush.msra.mxu0 0.0
        %554 = vmatpush.msra.mxu0 %v510
        %555 = vmatpush.msra.mxu0 %v509
        %556 = vmatpush.msra.mxu0 %v508
        %557 = vmatpush.msra.mxu0 %v507
        %558 = vmatmul.f32.gmra.mxu0 %v520
        %v559 = vpop.f32.mrf.mxu0
        %v560 = vadd.f32 0.0, %v559
        %561 = vdwg.mxu0
        %562 = vmatpush.msra.mxu0 0.0
        %563 = vmatpush.msra.mxu0 0.0
        %564 = vmatpush.msra.mxu0 0.0
        %565 = vmatpush.msra.mxu0 0.0
        %566 = vmatpush.msra.mxu0 0.0
        %567 = vmatpush.msra.mxu0 0.0
        %568 = vmatpush.msra.mxu0 0.0
        %569 = vmatpush.msra.mxu0 0.0
        %570 = vmatpush.msra.mxu0 0.0
        %571 = vmatpush.msra.mxu0 0.0
        %572 = vmatpush.msra.mxu0 0.0
        %573 = vmatpush.msra.mxu0 0.0
        %574 = vmatpush.msra.mxu0 %v514
        %575 = vmatpush.msra.mxu0 %v513
        %576 = vmatpush.msra.mxu0 %v512
        %577 = vmatpush.msra.mxu0 %v511
        %578 = vmatmul.f32.gmra.mxu0 %v520
        %v579 = vpop.f32.mrf.mxu0
        %v580 = vadd.f32 0.0, %v579
        %581 = vdwg.mxu0
        %582 = vmatpush.msra.mxu0 0.0
        %583 = vmatpush.msra.mxu0 0.0
        %584 = vmatpush.msra.mxu0 0.0
        %585 = vmatpush.msra.mxu0 0.0
        %586 = vmatpush.msra.mxu0 0.0
        %587 = vmatpush.msra.mxu0 0.0
        %588 = vmatpush.msra.mxu0 0.0
        %589 = vmatpush.msra.mxu0 0.0
        %590 = vmatpush.msra.mxu0 0.0
        %591 = vmatpush.msra.mxu0 0.0
        %592 = vmatpush.msra.mxu0 0.0
        %593 = vmatpush.msra.mxu0 0.0
        %594 = vmatpush.msra.mxu0 %v518
        %595 = vmatpush.msra.mxu0 %v517
        %596 = vmatpush.msra.mxu0 %v516
        %597 = vmatpush.msra.mxu0 %v515
        %598 = vmatmul.f32.gmra.mxu0 %v520
        %v599 = vpop.f32.mrf.mxu0
        %v600 = vadd.f32 0.0, %v599
        %601 = vdwg.mxu0
        %v602 = vld [vmem:[%s5] sm:$0xff]
        %v603 = vld [vmem:[%s5 + $0x8] sm:$0xff]
        %v604 = vld [vmem:[%s5 + $0x10] sm:$0xff]
        %v605 = vld [vmem:[%s5 + $0x18] sm:$0xff]
        %v606 = vld [vmem:[%s5 + $0x20] sm:$0xff]
        %v607 = vld [vmem:[%s5 + $0x28] sm:$0xff]
        %v608 = vld [vmem:[%s5 + $0x30] sm:$0xff]
        %v609 = vld [vmem:[%s5 + $0x38] sm:$0xff]
        %v610 = vld [vmem:[%s5 + $0x40] sm:$0xff]
        %v611 = vld [vmem:[%s5 + $0x48] sm:$0xff]
        %v612 = vld [vmem:[%s5 + $0x50] sm:$0xff]
        %v613 = vld [vmem:[%s5 + $0x58] sm:$0xff]
        %v614 = vld [vmem:[%s5 + $0x60] sm:$0xff]
        %v615 = vld [vmem:[%s5 + $0x68] sm:$0xff]
        %v616 = vld [vmem:[%s5 + $0x70] sm:$0xff]
        %v617 = vld [vmem:[%s5 + $0x78] sm:$0xff]
        %v619 = vsel %vm419, %v402, 0
        %621 = vmatpush.msra.mxu0 0.0
        %622 = vmatpush.msra.mxu0 0.0
        %623 = vmatpush.msra.mxu0 0.0
        %624 = vmatpush.msra.mxu0 0.0
        %625 = vmatpush.msra.mxu0 0.0
        %626 = vmatpush.msra.mxu0 0.0
        %627 = vmatpush.msra.mxu0 0.0
        %628 = vmatpush.msra.mxu0 0.0
        %629 = vmatpush.msra.mxu0 0.0
        %630 = vmatpush.msra.mxu0 0.0
        %631 = vmatpush.msra.mxu0 0.0
        %632 = vmatpush.msra.mxu0 0.0
        %633 = vmatpush.msra.mxu0 %v605
        %634 = vmatpush.msra.mxu0 %v604
        %635 = vmatpush.msra.mxu0 %v603
        %636 = vmatpush.msra.mxu0 %v602
        %637 = vmatmul.f32.gmra.mxu0 %v619
        %v638 = vpop.f32.mrf.mxu0
        %v639 = vadd.f32 0.0, %v638
        %640 = vdwg.mxu0
        %641 = vmatpush.msra.mxu0 0.0
        %642 = vmatpush.msra.mxu0 0.0
        %643 = vmatpush.msra.mxu0 0.0
        %644 = vmatpush.msra.mxu0 0.0
        %645 = vmatpush.msra.mxu0 0.0
        %646 = vmatpush.msra.mxu0 0.0
        %647 = vmatpush.msra.mxu0 0.0
        %648 = vmatpush.msra.mxu0 0.0
        %649 = vmatpush.msra.mxu0 0.0
        %650 = vmatpush.msra.mxu0 0.0
        %651 = vmatpush.msra.mxu0 0.0
        %652 = vmatpush.msra.mxu0 0.0
        %653 = vmatpush.msra.mxu0 %v609
        %654 = vmatpush.msra.mxu0 %v608
        %655 = vmatpush.msra.mxu0 %v607
        %656 = vmatpush.msra.mxu0 %v606
        %657 = vmatmul.f32.gmra.mxu0 %v619
        %v658 = vpop.f32.mrf.mxu0
        %v659 = vadd.f32 0.0, %v658
        %660 = vdwg.mxu0
        %661 = vmatpush.msra.mxu0 0.0
        %662 = vmatpush.msra.mxu0 0.0
        %663 = vmatpush.msra.mxu0 0.0
        %664 = vmatpush.msra.mxu0 0.0
        %665 = vmatpush.msra.mxu0 0.0
        %666 = vmatpush.msra.mxu0 0.0
        %667 = vmatpush.msra.mxu0 0.0
        %668 = vmatpush.msra.mxu0 0.0
        %669 = vmatpush.msra.mxu0 0.0
        %670 = vmatpush.msra.mxu0 0.0
        %671 = vmatpush.msra.mxu0 0.0
        %672 = vmatpush.msra.mxu0 0.0
        %673 = vmatpush.msra.mxu0 %v613
        %674 = vmatpush.msra.mxu0 %v612
        %675 = vmatpush.msra.mxu0 %v611
        %676 = vmatpush.msra.mxu0 %v610
        %677 = vmatmul.f32.gmra.mxu0 %v619
        %v678 = vpop.f32.mrf.mxu0
        %v679 = vadd.f32 0.0, %v678
        %680 = vdwg.mxu0
        %681 = vmatpush.msra.mxu0 0.0
        %682 = vmatpush.msra.mxu0 0.0
        %683 = vmatpush.msra.mxu0 0.0
        %684 = vmatpush.msra.mxu0 0.0
        %685 = vmatpush.msra.mxu0 0.0
        %686 = vmatpush.msra.mxu0 0.0
        %687 = vmatpush.msra.mxu0 0.0
        %688 = vmatpush.msra.mxu0 0.0
        %689 = vmatpush.msra.mxu0 0.0
        %690 = vmatpush.msra.mxu0 0.0
        %691 = vmatpush.msra.mxu0 0.0
        %692 = vmatpush.msra.mxu0 0.0
        %693 = vmatpush.msra.mxu0 %v617
        %694 = vmatpush.msra.mxu0 %v616
        %695 = vmatpush.msra.mxu0 %v615
        %696 = vmatpush.msra.mxu0 %v614
        %697 = vmatmul.f32.gmra.mxu0 %v619
        %v698 = vpop.f32.mrf.mxu0
        %v699 = vadd.f32 0.0, %v698
        %700 = vdwg.mxu0
        %v701 = vmul.f32 %v441, 0.35355338
        %v702 = vmul.f32 %v461, 0.35355338
        %v703 = vmul.f32 %v481, 0.35355338
        %v704 = vmul.f32 %v501, 0.35355338
        %vm705 = vcmask 64512
        %v707 = vsel %vm705, %v701, 0
        %v710 = vsel %vm705, %v540, 0
        %712 = vmatpush.xpose.msra.mxu0 0.0
        %713 = vmatpush.xpose.msra.mxu0 0.0
        %714 = vmatpush.xpose.msra.mxu0 0.0
        %715 = vmatpush.xpose.msra.mxu0 0.0
        %716 = vmatpush.xpose.msra.mxu0 0.0
        %717 = vmatpush.xpose.msra.mxu0 0.0
        %718 = vmatpush.xpose.msra.mxu0 0.0
        %719 = vmatpush.xpose.msra.mxu0 0.0
        %720 = vmatpush.xpose.msra.mxu0 0.0
        %721 = vmatpush.xpose.msra.mxu0 0.0
        %722 = vmatpush.xpose.msra.mxu0 0.0
        %723 = vmatpush.xpose.msra.mxu0 0.0
        %724 = vmatpush.xpose.msra.mxu0 0.0
        %725 = vmatpush.xpose.msra.mxu0 0.0
        %726 = vmatpush.xpose.msra.mxu0 0.0
        %727 = vmatpush.xpose.msra.mxu0 %v710
        %728 = vmatmul.f32.gmra.mxu0 %v707
        %v729 = vpop.f32.mrf.mxu0
        %v730 = vadd.f32 0.0, %v729
        %731 = vdwg.mxu0
        %v733 = vsel %vm705, %v702, 0
        %v736 = vsel %vm705, %v560, 0
        %738 = vmatpush.xpose.msra.mxu0 0.0
        %739 = vmatpush.xpose.msra.mxu0 0.0
        %740 = vmatpush.xpose.msra.mxu0 0.0
        %741 = vmatpush.xpose.msra.mxu0 0.0
        %742 = vmatpush.xpose.msra.mxu0 0.0
        %743 = vmatpush.xpose.msra.mxu0 0.0
        %744 = vmatpush.xpose.msra.mxu0 0.0
        %745 = vmatpush.xpose.msra.mxu0 0.0
        %746 = vmatpush.xpose.msra.mxu0 0.0
        %747 = vmatpush.xpose.msra.mxu0 0.0
        %748 = vmatpush.xpose.msra.mxu0 0.0
        %749 = vmatpush.xpose.msra.mxu0 0.0
        %750 = vmatpush.xpose.msra.mxu0 0.0
        %751 = vmatpush.xpose.msra.mxu0 0.0
        %752 = vmatpush.xpose.msra.mxu0 0.0
        %753 = vmatpush.xpose.msra.mxu0 %v736
        %754 = vmatmul.f32.gmra.mxu0 %v733
        %v755 = vpop.f32.mrf.mxu0
        %v756 = vadd.f32 0.0, %v755
        %757 = vdwg.mxu0
        %v759 = vsel %vm705, %v703, 0
        %v762 = vsel %vm705, %v580, 0
        %764 = vmatpush.xpose.msra.mxu0 0.0
        %765 = vmatpush.xpose.msra.mxu0 0.0
        %766 = vmatpush.xpose.msra.mxu0 0.0
        %767 = vmatpush.xpose.msra.mxu0 0.0
        %768 = vmatpush.xpose.msra.mxu0 0.0
        %769 = vmatpush.xpose.msra.mxu0 0.0
        %770 = vmatpush.xpose.msra.mxu0 0.0
        %771 = vmatpush.xpose.msra.mxu0 0.0
        %772 = vmatpush.xpose.msra.mxu0 0.0
        %773 = vmatpush.xpose.msra.mxu0 0.0
        %774 = vmatpush.xpose.msra.mxu0 0.0
        %775 = vmatpush.xpose.msra.mxu0 0.0
        %776 = vmatpush.xpose.msra.mxu0 0.0
        %777 = vmatpush.xpose.msra.mxu0 0.0
        %778 = vmatpush.xpose.msra.mxu0 0.0
        %779 = vmatpush.xpose.msra.mxu0 %v762
        %780 = vmatmul.f32.gmra.mxu0 %v759
        %v781 = vpop.f32.mrf.mxu0
        %v782 = vadd.f32 0.0, %v781
        %783 = vdwg.mxu0
        %v785 = vsel %vm705, %v704, 0
        %v788 = vsel %vm705, %v600, 0
        %790 = vmatpush.xpose.msra.mxu0 0.0
        %791 = vmatpush.xpose.msra.mxu0 0.0
        %792 = vmatpush.xpose.msra.mxu0 0.0
        %793 = vmatpush.xpose.msra.mxu0 0.0
        %794 = vmatpush.xpose.msra.mxu0 0.0
        %795 = vmatpush.xpose.msra.mxu0 0.0
        %796 = vmatpush.xpose.msra.mxu0 0.0
        %797 = vmatpush.xpose.msra.mxu0 0.0
        %798 = vmatpush.xpose.msra.mxu0 0.0
        %799 = vmatpush.xpose.msra.mxu0 0.0
        %800 = vmatpush.xpose.msra.mxu0 0.0
        %801 = vmatpush.xpose.msra.mxu0 0.0
        %802 = vmatpush.xpose.msra.mxu0 0.0
        %803 = vmatpush.xpose.msra.mxu0 0.0
        %804 = vmatpush.xpose.msra.mxu0 0.0
        %805 = vmatpush.xpose.msra.mxu0 %v788
        %806 = vmatmul.f32.gmra.mxu0 %v785
        %v807 = vpop.f32.mrf.mxu0
        %v808 = vadd.f32 0.0, %v807
        %809 = vdwg.mxu0
        %v810 = vsel %vm705, %v730, -inf
        %811 = vmax.xlane.f32.xlu0 %v810
        %v812 = vpop.xlane.xlu0 %811
        %v813 = vsel %vm705, %v756, -inf
        %814 = vmax.xlane.f32.xlu0 %v813
        %v815 = vpop.xlane.xlu0 %814
        %v816 = vsel %vm705, %v782, -inf
        %817 = vmax.xlane.f32.xlu0 %v816
        %v818 = vpop.xlane.xlu0 %817
        %v819 = vsel %vm705, %v808, -inf
        %820 = vmax.xlane.f32.xlu0 %v819
        %v821 = vpop.xlane.xlu0 %820
        %v822 = vsub.f32 %v730, %v812
        %v823 = vsub.f32 %v756, %v815
        %v824 = vsub.f32 %v782, %v818
        %v825 = vsub.f32 %v808, %v821
        %v826 = vmul.f32 %v822, 1.442695
        %v827 = vpow.pop %v826
        %v828 = vmul.f32 %v823, 1.442695
        %v829 = vpow.pop %v828
        %v830 = vmul.f32 %v824, 1.442695
        %v831 = vpow.pop %v830
        %v832 = vmul.f32 %v825, 1.442695
        %v833 = vpow.pop %v832
        %v834 = vsel %vm705, %v827, 0.0
        %835 = vadd.xlane.f32.xlu0 %v834
        %v836 = vpop.xlane.xlu0 %835
        %v837 = vsel %vm705, %v829, 0.0
        %838 = vadd.xlane.f32.xlu0 %v837
        %v839 = vpop.xlane.xlu0 %838
        %v840 = vsel %vm705, %v831, 0.0
        %841 = vadd.xlane.f32.xlu0 %v840
        %v842 = vpop.xlane.xlu0 %841
        %v843 = vsel %vm705, %v833, 0.0
        %844 = vadd.xlane.f32.xlu0 %v843
        %v845 = vpop.xlane.xlu0 %844
        %v846 = vrcp.pop %v836
        %v847 = vmul.f32 %v836, %v846
        %v848 = vsub.f32 1.0, %v847
        %v849 = vmul.f32 %v846, %v848
        %v850 = vadd.f32 %v846, %v849
        %vm851 = vweird.f32 %v836
        %vm852 = vweird.f32 %v846
        %vm853 = vmor %vm851, %vm852
        %v854 = vsel %vm853, %v846, %v850
        %v855 = vand.u32 2147483647, %v836
        %vm856 = vcmp.eq.f32.partialorder %v855, 8.507059e+37
        %v857 = vand.u32 %v836, 2147483648
        %v858 = vor.u32 1.1754944e-38, %v857
        %v859 = vsel %vm856, %v858, %v854
        %v860 = vrcp.pop %v839
        %v861 = vmul.f32 %v839, %v860
        %v862 = vsub.f32 1.0, %v861
        %v863 = vmul.f32 %v860, %v862
        %v864 = vadd.f32 %v860, %v863
        %vm865 = vweird.f32 %v839
        %vm866 = vweird.f32 %v860
        %vm867 = vmor %vm865, %vm866
        %v868 = vsel %vm867, %v860, %v864
        %v869 = vand.u32 2147483647, %v839
        %vm870 = vcmp.eq.f32.partialorder %v869, 8.507059e+37
        %v871 = vand.u32 %v839, 2147483648
        %v872 = vor.u32 1.1754944e-38, %v871
        %v873 = vsel %vm870, %v872, %v868
        %v874 = vrcp.pop %v842
        %v875 = vmul.f32 %v842, %v874
        %v876 = vsub.f32 1.0, %v875
        %v877 = vmul.f32 %v874, %v876
        %v878 = vadd.f32 %v874, %v877
        %vm879 = vweird.f32 %v842
        %vm880 = vweird.f32 %v874
        %vm881 = vmor %vm879, %vm880
        %v882 = vsel %vm881, %v874, %v878
        %v883 = vand.u32 2147483647, %v842
        %vm884 = vcmp.eq.f32.partialorder %v883, 8.507059e+37
        %v885 = vand.u32 %v842, 2147483648
        %v886 = vor.u32 1.1754944e-38, %v885
        %v887 = vsel %vm884, %v886, %v882
        %v888 = vrcp.pop %v845
        %v889 = vmul.f32 %v845, %v888
        %v890 = vsub.f32 1.0, %v889
        %v891 = vmul.f32 %v888, %v890
        %v892 = vadd.f32 %v888, %v891
        %vm893 = vweird.f32 %v845
        %vm894 = vweird.f32 %v888
        %vm895 = vmor %vm893, %vm894
        %v896 = vsel %vm895, %v888, %v892
        %v897 = vand.u32 2147483647, %v845
        %vm898 = vcmp.eq.f32.partialorder %v897, 8.507059e+37
        %v899 = vand.u32 %v845, 2147483648
        %v900 = vor.u32 1.1754944e-38, %v899
        %v901 = vsel %vm898, %v900, %v896
        %v902 = vmul.f32 %v827, %v859
        %v903 = vmul.f32 %v829, %v873
        %v904 = vmul.f32 %v831, %v887
        %v905 = vmul.f32 %v833, %v901
        %906 = vst.msk [vmem:[%s387] sm:$0xff] %vm705, %v902
        %907 = vst.msk [vmem:[%s387 + $0x8] sm:$0xff] %vm705, %v903
        %908 = vst.msk [vmem:[%s387 + $0x10] sm:$0xff] %vm705, %v904
        %909 = vst.msk [vmem:[%s387 + $0x18] sm:$0xff] %vm705, %v905
        %v911 = vsel %vm705, %v902, 0
        %913 = vmatpush.msra.mxu0 0.0
        %914 = vmatpush.msra.mxu0 0.0
        %915 = vmatpush.msra.mxu0 0.0
        %916 = vmatpush.msra.mxu0 0.0
        %917 = vmatpush.msra.mxu0 0.0
        %918 = vmatpush.msra.mxu0 0.0
        %919 = vmatpush.msra.mxu0 0.0
        %920 = vmatpush.msra.mxu0 0.0
        %921 = vmatpush.msra.mxu0 0.0
        %922 = vmatpush.msra.mxu0 0.0
        %923 = vmatpush.msra.mxu0 0.0
        %924 = vmatpush.msra.mxu0 0.0
        %925 = vmatpush.msra.mxu0 0.0
        %926 = vmatpush.msra.mxu0 0.0
        %927 = vmatpush.msra.mxu0 0.0
        %928 = vmatpush.msra.mxu0 %v639
        %929 = vmatmul.f32.gmra.mxu0 %v911
        %v930 = vpop.f32.mrf.mxu0
        %v931 = vadd.f32 0.0, %v930
        %932 = vdwg.mxu0
        %v934 = vsel %vm705, %v903, 0
        %936 = vmatpush.msra.mxu0 0.0
        %937 = vmatpush.msra.mxu0 0.0
        %938 = vmatpush.msra.mxu0 0.0
        %939 = vmatpush.msra.mxu0 0.0
        %940 = vmatpush.msra.mxu0 0.0
        %941 = vmatpush.msra.mxu0 0.0
        %942 = vmatpush.msra.mxu0 0.0
        %943 = vmatpush.msra.mxu0 0.0
        %944 = vmatpush.msra.mxu0 0.0
        %945 = vmatpush.msra.mxu0 0.0
        %946 = vmatpush.msra.mxu0 0.0
        %947 = vmatpush.msra.mxu0 0.0
        %948 = vmatpush.msra.mxu0 0.0
        %949 = vmatpush.msra.mxu0 0.0
        %950 = vmatpush.msra.mxu0 0.0
        %951 = vmatpush.msra.mxu0 %v659
        %952 = vmatmul.f32.gmra.mxu0 %v934
        %v953 = vpop.f32.mrf.mxu0
        %v954 = vadd.f32 0.0, %v953
        %955 = vdwg.mxu0
        %v957 = vsel %vm705, %v904, 0
        %959 = vmatpush.msra.mxu0 0.0
        %960 = vmatpush.msra.mxu0 0.0
        %961 = vmatpush.msra.mxu0 0.0
        %962 = vmatpush.msra.mxu0 0.0
        %963 = vmatpush.msra.mxu0 0.0
        %964 = vmatpush.msra.mxu0 0.0
        %965 = vmatpush.msra.mxu0 0.0
        %966 = vmatpush.msra.mxu0 0.0
        %967 = vmatpush.msra.mxu0 0.0
        %968 = vmatpush.msra.mxu0 0.0
        %969 = vmatpush.msra.mxu0 0.0
        %970 = vmatpush.msra.mxu0 0.0
        %971 = vmatpush.msra.mxu0 0.0
        %972 = vmatpush.msra.mxu0 0.0
        %973 = vmatpush.msra.mxu0 0.0
        %974 = vmatpush.msra.mxu0 %v679
        %975 = vmatmul.f32.gmra.mxu0 %v957
        %v976 = vpop.f32.mrf.mxu0
        %v977 = vadd.f32 0.0, %v976
        %978 = vdwg.mxu0
        %v980 = vsel %vm705, %v905, 0
        %982 = vmatpush.msra.mxu0 0.0
        %983 = vmatpush.msra.mxu0 0.0
        %984 = vmatpush.msra.mxu0 0.0
        %985 = vmatpush.msra.mxu0 0.0
        %986 = vmatpush.msra.mxu0 0.0
        %987 = vmatpush.msra.mxu0 0.0
        %988 = vmatpush.msra.mxu0 0.0
        %989 = vmatpush.msra.mxu0 0.0
        %990 = vmatpush.msra.mxu0 0.0
        %991 = vmatpush.msra.mxu0 0.0
        %992 = vmatpush.msra.mxu0 0.0
        %993 = vmatpush.msra.mxu0 0.0
        %994 = vmatpush.msra.mxu0 0.0
        %995 = vmatpush.msra.mxu0 0.0
        %996 = vmatpush.msra.mxu0 0.0
        %997 = vmatpush.msra.mxu0 %v699
        %998 = vmatmul.f32.gmra.mxu0 %v980
        %v999 = vpop.f32.mrf.mxu0
        %v1000 = vadd.f32 0.0, %v999
        %1001 = vdwg.mxu0
        %v1002 = vld [vmem:[%s6] sm:$0xff]
        %v1003 = vld [vmem:[%s6 + $0x8] sm:$0xff]
        %v1004 = vld [vmem:[%s6 + $0x10] sm:$0xff]
        %v1005 = vld [vmem:[%s6 + $0x18] sm:$0xff]
        %v1007 = vsel %vm705, %v931, 0
        %1009 = vmatpush.msra.mxu0 0.0
        %1010 = vmatpush.msra.mxu0 0.0
        %1011 = vmatpush.msra.mxu0 0.0
        %1012 = vmatpush.msra.mxu0 0.0
        %1013 = vmatpush.msra.mxu0 0.0
        %1014 = vmatpush.msra.mxu0 0.0
        %1015 = vmatpush.msra.mxu0 0.0
        %1016 = vmatpush.msra.mxu0 0.0
        %1017 = vmatpush.msra.mxu0 0.0
        %1018 = vmatpush.msra.mxu0 0.0
        %1019 = vmatpush.msra.mxu0 0.0
        %1020 = vmatpush.msra.mxu0 0.0
        %1021 = vmatpush.msra.mxu0 0.0
        %1022 = vmatpush.msra.mxu0 0.0
        %1023 = vmatpush.msra.mxu0 0.0
        %1024 = vmatpush.msra.mxu0 %v1002
        %1025 = vmatmul.f32.gmra.mxu0 %v1007
        %v1026 = vpop.f32.mrf.mxu0
        %v1027 = vadd.f32 0.0, %v1026
        %1028 = vdwg.mxu0
        %v1030 = vsel %vm705, %v954, 0
        %1032 = vmatpush.msra.mxu0 0.0
        %1033 = vmatpush.msra.mxu0 0.0
        %1034 = vmatpush.msra.mxu0 0.0
        %1035 = vmatpush.msra.mxu0 0.0
        %1036 = vmatpush.msra.mxu0 0.0
        %1037 = vmatpush.msra.mxu0 0.0
        %1038 = vmatpush.msra.mxu0 0.0
        %1039 = vmatpush.msra.mxu0 0.0
        %1040 = vmatpush.msra.mxu0 0.0
        %1041 = vmatpush.msra.mxu0 0.0
        %1042 = vmatpush.msra.mxu0 0.0
        %1043 = vmatpush.msra.mxu0 0.0
        %1044 = vmatpush.msra.mxu0 0.0
        %1045 = vmatpush.msra.mxu0 0.0
        %1046 = vmatpush.msra.mxu0 0.0
        %1047 = vmatpush.msra.mxu0 %v1003
        %1048 = vmatmul.f32.gmra.mxu0 %v1030
        %v1049 = vpop.f32.mrf.mxu0
        %v1050 = vadd.f32 0.0, %v1049
        %1051 = vdwg.mxu0
        %v1053 = vsel %vm705, %v977, 0
        %1055 = vmatpush.msra.mxu0 0.0
        %1056 = vmatpush.msra.mxu0 0.0
        %1057 = vmatpush.msra.mxu0 0.0
        %1058 = vmatpush.msra.mxu0 0.0
        %1059 = vmatpush.msra.mxu0 0.0
        %1060 = vmatpush.msra.mxu0 0.0
        %1061 = vmatpush.msra.mxu0 0.0
        %1062 = vmatpush.msra.mxu0 0.0
        %1063 = vmatpush.msra.mxu0 0.0
        %1064 = vmatpush.msra.mxu0 0.0
        %1065 = vmatpush.msra.mxu0 0.0
        %1066 = vmatpush.msra.mxu0 0.0
        %1067 = vmatpush.msra.mxu0 0.0
        %1068 = vmatpush.msra.mxu0 0.0
        %1069 = vmatpush.msra.mxu0 0.0
        %1070 = vmatpush.msra.mxu0 %v1004
        %1071 = vmatmul.f32.gmra.mxu0 %v1053
        %v1072 = vpop.f32.mrf.mxu0
        %v1073 = vadd.f32 0.0, %v1072
        %1074 = vdwg.mxu0
        %v1076 = vsel %vm705, %v1000, 0
        %1078 = vmatpush.msra.mxu0 0.0
        %1079 = vmatpush.msra.mxu0 0.0
        %1080 = vmatpush.msra.mxu0 0.0
        %1081 = vmatpush.msra.mxu0 0.0
        %1082 = vmatpush.msra.mxu0 0.0
        %1083 = vmatpush.msra.mxu0 0.0
        %1084 = vmatpush.msra.mxu0 0.0
        %1085 = vmatpush.msra.mxu0 0.0
        %1086 = vmatpush.msra.mxu0 0.0
        %1087 = vmatpush.msra.mxu0 0.0
        %1088 = vmatpush.msra.mxu0 0.0
        %1089 = vmatpush.msra.mxu0 0.0
        %1090 = vmatpush.msra.mxu0 0.0
        %1091 = vmatpush.msra.mxu0 0.0
        %1092 = vmatpush.msra.mxu0 0.0
        %1093 = vmatpush.msra.mxu0 %v1005
        %1094 = vmatmul.f32.gmra.mxu0 %v1076
        %v1095 = vpop.f32.mrf.mxu0
        %v1096 = vadd.f32 0.0, %v1095
        %1097 = vdwg.mxu0
        %v1098 = vsel %vm419, %v1027, 0.0
        %v1099 = vsel %vm419, %v1050, 0.0
        %v1100 = vadd.f32 %v1098, %v1099
        %v1101 = vsel %vm419, %v1073, 0.0
        %v1102 = vadd.f32 %v1100, %v1101
        %v1103 = vsel %vm419, %v1096, 0.0
        %v1104 = vadd.f32 %v1102, %v1103
        %v1105 = vadd.f32 %v1104, %v400
        %v1106 = vsel %vm419, %v1105, 0.0
        %1107 = vadd.xlane.f32.xlu0 %v1106
        %v1108 = vpop.xlane.xlu0 %1107
        %v1109 = vrcp.pop 32.0
        %v1110 = vmul.f32 32.0, %v1109
        %v1111 = vsub.f32 1.0, %v1110
        %v1112 = vmul.f32 %v1109, %v1111
        %v1113 = vadd.f32 %v1109, %v1112
        %vm1114 = vweird.f32 %v1109
        %v1115 = vsel %vm1114, %v1109, %v1113
        %v1116 = vmul.f32 %v1108, %v1115
        %v1117 = vsub.f32 %v1105, %v1116
        %v1118 = vmul.f32 %v1117, %v1117
        %v1119 = vsel %vm419, %v1118, 0.0
        %1120 = vadd.xlane.f32.xlu0 %v1119
        %v1121 = vpop.xlane.xlu0 %1120
        %v1122 = vmul.f32 %v1121, %v1115
        %v1123 = vadd.f32 %v1122, 1e-06
        %v1124 = vrsqrt.pop %v1123
        %v1125 = vmul.f32 %v1124, %v1123
        %v1126 = vmul.f32 %v1125, %v1124
        %v1127 = vmul.f32 0.5, %v1126
        %v1128 = vsub.f32 1.5, %v1127
        %v1129 = vmul.f32 %v1124, %v1128
        %vm1130 = vweird.f32 %v1123
        %vm1131 = vweird.f32 %v1124
        %vm1132 = vmor %vm1130, %vm1131
        %v1133 = vsel %vm1132, %v1124, %v1129
        %v1134 = vmul.f32 %v1117, %v1133
        %v1135 = vld [vmem:[%s7] sm:$0x1]
        %v1136 = vld [vmem:[%s8] sm:$0x1]
        %v1138 = vperm.slane %v1135, 0
        %v1140 = vmul.f32 %v1134, %v1138
        %v1142 = vperm.slane %v1136, 0
        %v1144 = vadd.f32 %v1140, %v1142
        %1145 = vst.msk [vmem:[%s380] sm:$0xff] %vm419, %v1144
        %s1146 = sand.u32 %s240, 1
        %s1147 = scalar_lea.sflag [#allocation3], %s1146
        %s1148 = sand.u32 %s240, 1
        %s1149 = smul.addr %s1148, 8
        %s1150 = scalar_lea.vmem [#allocation2], %s1149
        %s1151 = sand.u32 %s266, 1
        %s1152 = scalar_lea.sflag [#allocation5], %s1151
        %s1153 = sand.u32 %s266, 1
        %s1154 = smul.addr %s1153, 32
        %s1155 = scalar_lea.vmem [#allocation4], %s1154
        // Predicated region
        $region57: #{tpu_custom_call.1} parent=55 // pred_check
          %p1156 = pneg %p250
        $region58: #{tpu_custom_call.1} parent=55 // pred_check_branch
          %1158 = sbr.rel (%p1156) target = $region60
        $region59: #{tpu_custom_call.1} parent=55 // pred_region
          %1160 = vsyncadd %s1147, 0
          %s1161 = smul.addr %s28, 8
          %s1162 = scalar_lea.hbm %s9, %s1161
          %s1164 = sshll.u32 %s1150, 4
          %s1165 = int_to_ptr.vmem [resolvable:$true] %s1164
          %s1166 = sshll.u32 %s1162, 4
          %s1167 = int_to_ptr.hbm [resolvable:$true] %s1166
          %1169 = dma.vmem_to_hbm [thread:$0]  %s1165, 128, %s1167, %s1147
        $region60: #{tpu_custom_call.1} parent=55 // pred_fallthru
          _
        // Predicated region
        $region61: #{tpu_custom_call.1} parent=55 // pred_check
          %p1170 = pneg %p276
        $region62: #{tpu_custom_call.1} parent=55 // pred_check_branch
          %1172 = sbr.rel (%p1170) target = $region64
        $region63: #{tpu_custom_call.1} parent=55 // pred_region
          %1174 = vsyncadd %s1152, 0
          %s1175 = smul.addr %s28, 4
          %s1176 = smul.addr %s1175, 8
          %s1177 = scalar_lea.hbm %s10, %s1176
          %s1178 = sshll.u32 %s1155, 4
          %s1179 = int_to_ptr.vmem [resolvable:$true] %s1178
          %s1180 = sshll.u32 %s1177, 4
          %s1181 = int_to_ptr.hbm [resolvable:$true] %s1180
          %1186 = dma.vmem_to_hbm [thread:$0]  %s1179, 512, %s1181, %s1152, 128, 128, 8
        $region64: #{tpu_custom_call.1} parent=55 // pred_fallthru
          _
      $region56: #{tpu_custom_call.1} parent=5 // pred_fallthru
        _
      %p1187 = scmp.le.s32.totalorder 2, %s23
      // Predicated region
      $region65: #{tpu_custom_call.1} parent=5 // pred_check
        %p1188 = pneg %p1187
      $region66: #{tpu_custom_call.1} parent=5 // pred_check_branch
        %1190 = sbr.rel (%p1188) target = $region68
      $region67: #{tpu_custom_call.1} parent=5 // pred_region
        %s1191 = ssub.s32 %s23, 2
        // Predicated region
        $region69: #{tpu_custom_call.1} parent=67 // pred_check
          %p1192 = pneg %p256
        $region70: #{tpu_custom_call.1} parent=67 // pred_check_branch
          %1194 = sbr.rel (%p1192) target = $region72
        $region71: #{tpu_custom_call.1} parent=67 // pred_region
          %s1195 = sand.u32 %s241, 1
          %s1196 = scalar_lea.sflag [#allocation3], %s1195
          %s1197 = sand.u32 %s241, 1
          %s1198 = smul.addr %s1197, 8
          %s1199 = scalar_lea.vmem [#allocation2], %s1198
          %1201 = dma.done %s1196, 128
        $region72: #{tpu_custom_call.1} parent=67 // pred_fallthru
          _
        // Predicated region
        $region73: #{tpu_custom_call.1} parent=67 // pred_check
          %p1202 = pneg %p282
        $region74: #{tpu_custom_call.1} parent=67 // pred_check_branch
          %1204 = sbr.rel (%p1202) target = $region76
        $region75: #{tpu_custom_call.1} parent=67 // pred_region
          %s1205 = sand.u32 %s267, 1
          %s1206 = scalar_lea.sflag [#allocation5], %s1205
          %s1207 = sand.u32 %s267, 1
          %s1208 = smul.addr %s1207, 32
          %s1209 = scalar_lea.vmem [#allocation4], %s1208
          %1211 = dma.done %s1206, 512
        $region76: #{tpu_custom_call.1} parent=67 // pred_fallthru
          _
      $region68: #{tpu_custom_call.1} parent=5 // pred_fallthru
        _
    $region6: #{tpu_custom_call.1} parent=1 // loop_footer
      %s27 = sadd.s32 1, %s23
    $region7: #{tpu_custom_call.1} parent=1 // loop_footer_branch
      %22 = sbr.rel target = $region3
    $region8: #{tpu_custom_call.1} parent=1 // loop_exit
      _
    %1212 = vsyncpa [#allocation3], 1
    %s1213 = scalar_lea.sflag [#allocation3], 1
    %1214 = vsyncpa %s1213, 1
    %1215 = vsyncpa [#allocation5], 1
    %s1216 = scalar_lea.sflag [#allocation5], 1
    %1217 = vsyncpa %s1216, 1

</llo_original>
